<compile_context>
chip_gen: v7x
topology: tpu7x:2x2x1
jax: 0.10.0
libtpu: 0.0.40
codegen_flags: <defaults>
</compile_context>

<pallas_src>
import jax
import jax.numpy as jnp
from jax.experimental import pallas as pl
from jax.experimental.pallas import tpu as pltpu

NUM_CLASSES = 10
FEAT1 = 2048            # resnet50 fc.in_features
FEAT2 = 1280            # efficientnet_b0 classifier[1].in_features
FTOT = FEAT1 + FEAT2    # 3328 = 26 * 128 (lane-aligned combined feature width)
N_PAD = 128             # lane-dense padded class dimension


def _round_up(n, m):
    return ((n + m - 1) // m) * m


def _default_batch_tile():
    """MXU-filling batch tile: 128 rows on v5e (128x128 MXU), 256 on v6e/v7x (256-wide)."""
    try:
        kind = jax.devices()[0].device_kind.lower()
    except Exception:
        kind = ""
    return 256 if ("v6" in kind or "v7" in kind) else 128


# ---------------------------------------------------------------------------
# Kernel: both branches' first layers in one matmul, then both classifier heads with the
# ensemble 0.5 folded into the weights, in a second matmul.  Weights stay resident.
#   p_ref : (TB, C)        bf16   pooled (GAP'd) features
#   wa    : (C, FTOT)      bf16   [w1a | w2a]
#   ba    : (1, FTOT)      f32    [b1a | b2a]
#   wb    : (FTOT, N_PAD)  bf16   [w1b ; w2b] * 0.5, zero-padded to 128 lanes
#   bb    : (1, N_PAD)     f32    (b1b + b2b) / 2, zero-padded
#   o_ref : (TB, N_PAD)    f32    ensemble logits (lane-dense, unmasked stores)
# ---------------------------------------------------------------------------
def ensemble_heads_kernel(p_ref, wa_ref, ba_ref, wb_ref, bb_ref, o_ref):
    # ReLU is elementwise, so applying it to the concatenated features is exactly the
    # per-branch ReLU.  bf16 MXU operands, f32 accumulation, f32 bias/ReLU.
    h = jnp.dot(p_ref[...], wa_ref[...],
                preferred_element_type=jnp.float32) + ba_ref[...]
    h = jnp.maximum(h, 0.0)

    # logits = h @ ([w1b; w2b] * 0.5) + (b1b + b2b)/2  ==  (l1 + l2) / 2
    o_ref[...] = jnp.dot(h.astype(jnp.bfloat16), wb_ref[...],
                         preferred_element_type=jnp.float32) + bb_ref[...]


# ---------------------------------------------------------------------------
# Parameter construction (deterministic, synthetic).
# ---------------------------------------------------------------------------
def init_params(key, in_channels, num_classes):
    ks = jax.random.split(key, 8)

    def w(k, shape, fan_in):
        return jax.random.normal(k, shape, jnp.float32) / jnp.sqrt(jnp.float32(fan_in))

    return {
        "w1a": w(ks[0], (in_channels, FEAT1), in_channels),
        "b1a": w(ks[1], (1, FEAT1), FEAT1),
        "w1b": w(ks[2], (FEAT1, num_classes), FEAT1),
        "b1b": w(ks[3], (1, num_classes), num_classes),
        "w2a": w(ks[4], (in_channels, FEAT2), in_channels),
        "b2a": w(ks[5], (1, FEAT2), FEAT2),
        "w2b": w(ks[6], (FEAT2, num_classes), FEAT2),
        "b2b": w(ks[7], (1, num_classes), num_classes),
    }


# ---------------------------------------------------------------------------
# One-time weight packing (hoisted out of the per-call forward path).
# ---------------------------------------------------------------------------
def prepare_params(params, num_classes=NUM_CLASSES):
    wa = jnp.concatenate([params["w1a"], params["w2a"]], axis=1).astype(jnp.bfloat16)
    ba = jnp.concatenate([params["b1a"], params["b2a"]], axis=1).astype(jnp.float32)

    wb = jnp.concatenate([params["w1b"], params["w2b"]], axis=0) * 0.5   # fold ensemble 0.5
    bb = (params["b1b"] + params["b2b"]) * 0.5
    ftot = wb.shape[0]
    wb_p = jnp.zeros((ftot, N_PAD), jnp.float32).at[:, :num_classes].set(wb)
    bb_p = jnp.zeros((1, N_PAD), jnp.float32).at[:, :num_classes].set(bb)

    return {"wa": wa, "ba": ba, "wb": wb_p.astype(jnp.bfloat16), "bb": bb_p}


# ---------------------------------------------------------------------------
# Forward: GAP in XLA (tiny output), single pallas_call over batch tiles, slice result.
# ---------------------------------------------------------------------------
def ensemble_forward(x, packed, num_classes=NUM_CLASSES, batch_tile=None):
    B, C, H, W = x.shape

    # Global average pool hoisted to XLA (f32 accumulation).  pooled is only B*C values,
    # so the Pallas kernel's VMEM use is independent of the image size and the raw image
    # tensor is never padded or copied.
    pooled = jnp.mean(x.reshape(B, C, H * W).astype(jnp.float32), axis=-1)
    pooled = pooled.astype(jnp.bfloat16)

    TB = batch_tile if batch_tile is not None else _default_batch_tile()
    TB = min(TB, _round_up(B, 8))          # small batch -> exactly one grid step
    B_pad = _round_up(B, TB)
    if B_pad != B:                         # pad only the tiny pooled features
        pooled = jnp.zeros((B_pad, C), jnp.bfloat16).at[:B].set(pooled)

    grid = (B_pad // TB,)
    resident = dict(pipeline_mode=pl.Buffered(1))   # constant blocks: single-buffered

    out_padded = pl.pallas_call(
        ensemble_heads_kernel,
        grid=grid,
        in_specs=[
            pl.BlockSpec((TB, C), lambda i: (i, 0)),                  # batch-tiled pooled
            pl.BlockSpec((C, FTOT), lambda i: (0, 0), **resident),    # resident weights
            pl.BlockSpec((1, FTOT), lambda i: (0, 0), **resident),
            pl.BlockSpec((FTOT, N_PAD), lambda i: (0, 0), **resident),
            pl.BlockSpec((1, N_PAD), lambda i: (0, 0), **resident),
        ],
        out_specs=pl.BlockSpec((TB, N_PAD), lambda i: (i, 0)),
        out_shape=jax.ShapeDtypeStruct((B_pad, N_PAD), jnp.float32),
        compiler_params=pltpu.CompilerParams(
            dimension_semantics=("parallel",),
            vmem_limit_bytes=32 * 1024 * 1024,
        ),
    )(pooled, packed["wa"], packed["ba"], packed["wb"], packed["bb"])

    return out_padded[:B, :num_classes]


# Pure-JAX f32 reference (original two-branch formulation) for correctness checking.
def ensemble_forward_ref(x, params):
    pooled = jnp.mean(x.reshape(x.shape[0], x.shape[1], -1), axis=-1)
    h1 = jnp.maximum(pooled @ params["w1a"] + params["b1a"], 0.0)
    l1 = h1 @ params["w1b"] + params["b1b"]
    h2 = jnp.maximum(pooled @ params["w2a"] + params["b2a"], 0.0)
    l2 = h2 @ params["w2b"] + params["b2b"]
    return (l1 + l2) / 2


if __name__ == "__main__":
    key = jax.random.PRNGKey(0)
    kx, kp = jax.random.split(key)

    # Small NCHW image batch (RGB), consistent with the module's image input.
    x = jax.random.normal(kx, (2, 3, 16, 16), jnp.float32)
    params = init_params(kp, in_channels=3, num_classes=NUM_CLASSES)

    packed = prepare_params(params, NUM_CLASSES)      # one-time packing, outside the jit
    fwd = jax.jit(ensemble_forward)

    out = jax.block_until_ready(fwd(x, packed))

    ref = ensemble_forward_ref(x, params)
    assert out.shape == (2, NUM_CLASSES)
    # bf16 MXU operands with f32 accumulation -> small relative error vs f32 reference.
    assert jnp.allclose(out, ref, atol=2e-2, rtol=2e-2), "mismatch vs pure-JAX reference"

    print("KERNEL_OK")
</pallas_src>

<mosaic_0001>
module attributes {stable_mosaic.version = 11 : i64} {
  func.func @ensemble_heads_kernel(%arg0: i32, %arg1: memref<8x3xbf16, #tpu.memory_space<vmem>>, %arg2: memref<3x3328xbf16, #tpu.memory_space<vmem>>, %arg3: memref<1x3328xf32, #tpu.memory_space<vmem>>, %arg4: memref<3328x128xbf16, #tpu.memory_space<vmem>>, %arg5: memref<1x128xf32, #tpu.memory_space<vmem>>, %arg6: memref<8x128xf32, #tpu.memory_space<vmem>>) attributes {dimension_semantics = [#tpu.dimension_semantics<parallel>], iteration_bounds = array<i64: 1>, scalar_prefetch = 0 : i64, scratch_operands = 0 : i64, tpu.core_type = #tpu.core_type<tc>, window_params = [{transform_indices = @transform_0, window_bounds = array<i64: 8, 3>}, {pipeline_mode = #tpu.pipeline_mode<synchronous>, transform_indices = @transform_1, window_bounds = array<i64: 3, 3328>}, {pipeline_mode = #tpu.pipeline_mode<synchronous>, transform_indices = @transform_2, window_bounds = array<i64: 1, 3328>}, {pipeline_mode = #tpu.pipeline_mode<synchronous>, transform_indices = @transform_3, window_bounds = array<i64: 3328, 128>}, {pipeline_mode = #tpu.pipeline_mode<synchronous>, transform_indices = @transform_4, window_bounds = array<i64: 1, 128>}, {transform_indices = @transform_5, window_bounds = array<i64: 8, 128>}]} {
    %c0 = arith.constant 0 : index
    %c0_0 = arith.constant 0 : index
    %0 = vector.load %arg1[%c0, %c0_0] : memref<8x3xbf16, #tpu.memory_space<vmem>>, vector<8x3xbf16>
    %c0_1 = arith.constant 0 : index
    %c0_2 = arith.constant 0 : index
    %1 = vector.load %arg2[%c0_1, %c0_2] : memref<3x3328xbf16, #tpu.memory_space<vmem>>, vector<3x3328xbf16>
    %cst = arith.constant dense<0.000000e+00> : vector<8x3328xf32>
    %2 = tpu.matmul %0, %1, %cst {dimension_numbers = #tpu.dot_dimension_numbers<[1], [0], [0], [1], [0, 0, 1, 1], [], []>} : vector<8x3xbf16>, vector<3x3328xbf16>, vector<8x3328xf32> -> vector<8x3328xf32>
    %c0_3 = arith.constant 0 : index
    %c0_4 = arith.constant 0 : index
    %3 = vector.load %arg3[%c0_3, %c0_4] : memref<1x3328xf32, #tpu.memory_space<vmem>>, vector<1x3328xf32>
    %4 = vector.broadcast %3 : vector<1x3328xf32> to vector<8x3328xf32>
    %5 = arith.addf %2, %4 : vector<8x3328xf32>
    %cst_5 = arith.constant 0.000000e+00 : f32
    %6 = vector.broadcast %cst_5 : f32 to vector<8x3328xf32>
    %7 = arith.maximumf %5, %6 : vector<8x3328xf32>
    %8 = arith.truncf %7 : vector<8x3328xf32> to vector<8x3328xbf16>
    %c0_6 = arith.constant 0 : index
    %c0_7 = arith.constant 0 : index
    %9 = vector.load %arg4[%c0_6, %c0_7] : memref<3328x128xbf16, #tpu.memory_space<vmem>>, vector<3328x128xbf16>
    %cst_8 = arith.constant dense<0.000000e+00> : vector<8x128xf32>
    %10 = tpu.matmul %8, %9, %cst_8 {dimension_numbers = #tpu.dot_dimension_numbers<[1], [0], [0], [1], [0, 0, 1, 1], [], []>} : vector<8x3328xbf16>, vector<3328x128xbf16>, vector<8x128xf32> -> vector<8x128xf32>
    %c0_9 = arith.constant 0 : index
    %c0_10 = arith.constant 0 : index
    %11 = vector.load %arg5[%c0_9, %c0_10] : memref<1x128xf32, #tpu.memory_space<vmem>>, vector<1x128xf32>
    %12 = vector.broadcast %11 : vector<1x128xf32> to vector<8x128xf32>
    %13 = arith.addf %10, %12 : vector<8x128xf32>
    %c0_11 = arith.constant 0 : index
    %c0_12 = arith.constant 0 : index
    %14 = vector.load %arg6[%c0_11, %c0_12] : memref<8x128xf32, #tpu.memory_space<vmem>>, vector<8x128xf32>
    tpu.vector_store %arg6[%c0_11, %c0_12], %13 {strides = array<i32>} : memref<8x128xf32, #tpu.memory_space<vmem>>, vector<8x128xf32>,
    return
  }
  func.func @transform_0(%arg0: i32) -> (i32, i32) {
    %c0_i32 = arith.constant 0 : i32
    %c0_i32_0 = arith.constant 0 : i32
    return %arg0, %c0_i32 : i32, i32
  }
  func.func @transform_1(%arg0: i32) -> (i32, i32) {
    %c0_i32 = arith.constant 0 : i32
    %c0_i32_0 = arith.constant 0 : i32
    %c0_i32_1 = arith.constant 0 : i32
    return %c0_i32, %c0_i32_0 : i32, i32
  }
  func.func @transform_2(%arg0: i32) -> (i32, i32) {
    %c0_i32 = arith.constant 0 : i32
    %c0_i32_0 = arith.constant 0 : i32
    %c0_i32_1 = arith.constant 0 : i32
    return %c0_i32, %c0_i32_0 : i32, i32
  }
  func.func @transform_3(%arg0: i32) -> (i32, i32) {
    %c0_i32 = arith.constant 0 : i32
    %c0_i32_0 = arith.constant 0 : i32
    %c0_i32_1 = arith.constant 0 : i32
    return %c0_i32, %c0_i32_0 : i32, i32
  }
  func.func @transform_4(%arg0: i32) -> (i32, i32) {
    %c0_i32 = arith.constant 0 : i32
    %c0_i32_0 = arith.constant 0 : i32
    %c0_i32_1 = arith.constant 0 : i32
    return %c0_i32, %c0_i32_0 : i32, i32
  }
  func.func @transform_5(%arg0: i32) -> (i32, i32) {
    %c0_i32 = arith.constant 0 : i32
    %c0_i32_0 = arith.constant 0 : i32
    return %arg0, %c0_i32 : i32, i32
  }
}

</mosaic_0001>

<llo_original>
// kernel: ensemble_forward.1
$region0: #{ensemble_forward.1}
  #allocation0 [shape = 'u32[]', space=smem, size = 0x4, offset = 0x4, fixed_abs, tag = 'smem constant byte address 0x4 - core index']
  #allocation1 [shape = 'u32[144,128]{1,0:T(1,128)}', space=vmem, size = 0x12000, scoped, tag = 'internal scratch']
  %s0 = inlined_call_operand.vmem [shape: bf16[8,3], index: 0, kind: input, shape index: {}]
  %s1 = inlined_call_operand.vmem [shape: bf16[3,3328], index: 1, kind: input, shape index: {}]
  %s2 = inlined_call_operand.vmem [shape: f32[1,3328], index: 2, kind: input, shape index: {}]
  %s3 = inlined_call_operand.hbm [shape: bf16[3328,128], index: 3, kind: input, shape index: {}]
  %s4 = inlined_call_operand.vmem [shape: f32[1,128], index: 4, kind: input, shape index: {}]
  %s5 = inlined_call_operand.vmem [shape: f32[8,128], index: 5, kind: output, shape index: {}]
  %s6 = sld [smem:[#allocation0]]
  $region34: #{ensemble_forward.1} parent=0
    _
  %s8 = ssub.s32 1, %s6
  %s9 = scalar_select 0, %s8, %s6
  $region1: #{ensemble_forward.1} parent=0
    #allocation2 [shape = 'u8[851968]{0}', space=vmem, size = 0xd0000, scoped, tag = 'input window, operand 3, single buffered']
    #allocation3 [shape = 's32[1]{0}', space=sflag, size = 0x4, scoped, tag = 'scoped memory for ensemble_forward.1']
    %10 = vsyncpa [#allocation3], 0
    // Predicated region
    $region2: #{ensemble_forward.1} parent=1 // pred_check
      _
    $region3: #{ensemble_forward.1} parent=1 // pred_check_branch
      %12 = sbr.rel (0) target = $region5
    $region4: #{ensemble_forward.1} parent=1 // pred_region
      _
    $region5: #{ensemble_forward.1} parent=1 // pred_fallthru
      _
    // Predicated region
    $region6: #{ensemble_forward.1} parent=1 // pred_check
      _
    $region7: #{ensemble_forward.1} parent=1 // pred_check_branch
      %14 = sbr.rel (0) target = $region9
    $region8: #{ensemble_forward.1} parent=1 // pred_region
      _
    $region9: #{ensemble_forward.1} parent=1 // pred_fallthru
      _
    // Predicated region
    $region10: #{ensemble_forward.1} parent=1 // pred_check
      _
    $region11: #{ensemble_forward.1} parent=1 // pred_check_branch
      %16 = sbr.rel (0) target = $region13
    $region12: #{ensemble_forward.1} parent=1 // pred_region
      _
    $region13: #{ensemble_forward.1} parent=1 // pred_fallthru
      _
    // Predicated region
    $region14: #{ensemble_forward.1} parent=1 // pred_check
      _
    $region15: #{ensemble_forward.1} parent=1 // pred_check_branch
      %18 = sbr.rel (0) target = $region17
    $region16: #{ensemble_forward.1} parent=1 // pred_region
      %s20 = ssub.s32 26624, 26624
      %21 = vsyncadd [#allocation3], %s20
      %s22 = sshll.u32 [#allocation2], 4
      %s23 = int_to_ptr.vmem [resolvable:$true] %s22
      %28 = dma.hbm_to_vmem [thread:$0]  %s3, 26624, %s23, [#allocation3], 64, 64, 4
    $region17: #{ensemble_forward.1} parent=1 // pred_fallthru
      _
    // Predicated region
    $region18: #{ensemble_forward.1} parent=1 // pred_check
      _
    $region19: #{ensemble_forward.1} parent=1 // pred_check_branch
      %30 = sbr.rel (0) target = $region21
    $region20: #{ensemble_forward.1} parent=1 // pred_region
      _
    $region21: #{ensemble_forward.1} parent=1 // pred_fallthru
      _
    // Predicated region
    $region22: #{ensemble_forward.1} parent=1 // pred_check
      _
    $region23: #{ensemble_forward.1} parent=1 // pred_check_branch
      %32 = sbr.rel (0) target = $region25
    $region24: #{ensemble_forward.1} parent=1 // pred_region
      %33 = dma.done [#allocation3], 26624
    $region25: #{ensemble_forward.1} parent=1 // pred_fallthru
      _
    %v35 = vld [vmem:[%s0] sm:$0xf]
    %v36 = vld [vmem:[%s1] sm:$0xff]
    %v37 = vld [vmem:[%s1 + $0x8] sm:$0xff]
    %v38 = vld [vmem:[%s1 + $0x10] sm:$0xff]
    %v39 = vld [vmem:[%s1 + $0x18] sm:$0xff]
    %v40 = vld [vmem:[%s1 + $0x20] sm:$0xff]
    %v41 = vld [vmem:[%s1 + $0x28] sm:$0xff]
    %v42 = vld [vmem:[%s1 + $0x30] sm:$0xf]
    %v43 = vld [vmem:[%s2] sm:$0xff]
    %v44 = vld [vmem:[%s2 + $0x8] sm:$0xff]
    %v45 = vld [vmem:[%s2 + $0x10] sm:$0xff]
    %v46 = vld [vmem:[%s2 + $0x18] sm:$0x3]
    %v51 = vlaneseq
    %v52 = vshrl.u32 %v51, 7
    %v53 = vsub.s32 0, %v52
    %v54 = vrot.slane %v43, %v53
    %v55 = vlaneseq
    %v56 = vshrl.u32 %v55, 7
    %v57 = vsub.s32 1, %v56
    %v58 = vrot.slane %v43, %v57
    %v59 = vlaneseq
    %v60 = vshrl.u32 %v59, 7
    %v61 = vsub.s32 2, %v60
    %v62 = vrot.slane %v43, %v61
    %v63 = vlaneseq
    %v64 = vshrl.u32 %v63, 7
    %v65 = vsub.s32 3, %v64
    %v66 = vrot.slane %v43, %v65
    %v67 = vlaneseq
    %v68 = vshrl.u32 %v67, 7
    %v69 = vsub.s32 4, %v68
    %v70 = vrot.slane %v43, %v69
    %v71 = vlaneseq
    %v72 = vshrl.u32 %v71, 7
    %v73 = vsub.s32 5, %v72
    %v74 = vrot.slane %v43, %v73
    %v75 = vlaneseq
    %v76 = vshrl.u32 %v75, 7
    %v77 = vsub.s32 6, %v76
    %v78 = vrot.slane %v43, %v77
    %v79 = vlaneseq
    %v80 = vshrl.u32 %v79, 7
    %v81 = vsub.s32 7, %v80
    %v82 = vrot.slane %v43, %v81
    %v83 = vlaneseq
    %v84 = vshrl.u32 %v83, 7
    %v85 = vsub.s32 0, %v84
    %v86 = vrot.slane %v44, %v85
    %v87 = vlaneseq
    %v88 = vshrl.u32 %v87, 7
    %v89 = vsub.s32 1, %v88
    %v90 = vrot.slane %v44, %v89
    %v91 = vlaneseq
    %v92 = vshrl.u32 %v91, 7
    %v93 = vsub.s32 2, %v92
    %v94 = vrot.slane %v44, %v93
    %v95 = vlaneseq
    %v96 = vshrl.u32 %v95, 7
    %v97 = vsub.s32 3, %v96
    %v98 = vrot.slane %v44, %v97
    %v99 = vlaneseq
    %v100 = vshrl.u32 %v99, 7
    %v101 = vsub.s32 4, %v100
    %v102 = vrot.slane %v44, %v101
    %v103 = vlaneseq
    %v104 = vshrl.u32 %v103, 7
    %v105 = vsub.s32 5, %v104
    %v106 = vrot.slane %v44, %v105
    %v107 = vlaneseq
    %v108 = vshrl.u32 %v107, 7
    %v109 = vsub.s32 6, %v108
    %v110 = vrot.slane %v44, %v109
    %v111 = vlaneseq
    %v112 = vshrl.u32 %v111, 7
    %v113 = vsub.s32 7, %v112
    %v114 = vrot.slane %v44, %v113
    %v115 = vlaneseq
    %v116 = vshrl.u32 %v115, 7
    %v117 = vsub.s32 0, %v116
    %v118 = vrot.slane %v45, %v117
    %v119 = vlaneseq
    %v120 = vshrl.u32 %v119, 7
    %v121 = vsub.s32 1, %v120
    %v122 = vrot.slane %v45, %v121
    %v123 = vlaneseq
    %v124 = vshrl.u32 %v123, 7
    %v125 = vsub.s32 2, %v124
    %v126 = vrot.slane %v45, %v125
    %v127 = vlaneseq
    %v128 = vshrl.u32 %v127, 7
    %v129 = vsub.s32 3, %v128
    %v130 = vrot.slane %v45, %v129
    %v131 = vlaneseq
    %v132 = vshrl.u32 %v131, 7
    %v133 = vsub.s32 4, %v132
    %v134 = vrot.slane %v45, %v133
    %v135 = vlaneseq
    %v136 = vshrl.u32 %v135, 7
    %v137 = vsub.s32 5, %v136
    %v138 = vrot.slane %v45, %v137
    %v139 = vlaneseq
    %v140 = vshrl.u32 %v139, 7
    %v141 = vsub.s32 6, %v140
    %v142 = vrot.slane %v45, %v141
    %v143 = vlaneseq
    %v144 = vshrl.u32 %v143, 7
    %v145 = vsub.s32 7, %v144
    %v146 = vrot.slane %v45, %v145
    %v147 = vlaneseq
    %v148 = vshrl.u32 %v147, 7
    %v149 = vsub.s32 0, %v148
    %v150 = vrot.slane %v46, %v149
    %v151 = vlaneseq
    %v152 = vshrl.u32 %v151, 7
    %v153 = vsub.s32 1, %v152
    %v154 = vrot.slane %v46, %v153
    %v188 = vcombine.high %v36, %v36
    %v190 = vunpack.c.l.s4 1983009808
    %v191 = vunpack.c.0.s8 %v190
    %v192 = vlaneseq
    %v193 = vshrl.u32 %v192, 7
    %v194 = vsub.s32 %v191, %v193
    %v195 = vrot.slane %v36, %v194
    %v197 = vunpack.c.l.s4 1983009808
    %v198 = vunpack.c.0.s8 %v197
    %v199 = vlaneseq
    %v200 = vshrl.u32 %v199, 7
    %v201 = vsub.s32 %v198, %v200
    %v202 = vrot.slane %v188, %v201
    %v203 = vcombine.high %v195, %v195
    %v204 = vcombine.high %v202, %v202
    %v205 = vcombine.high %v37, %v37
    %v207 = vunpack.c.l.s4 1983009808
    %v208 = vunpack.c.0.s8 %v207
    %v209 = vlaneseq
    %v210 = vshrl.u32 %v209, 7
    %v211 = vsub.s32 %v208, %v210
    %v212 = vrot.slane %v37, %v211
    %v214 = vunpack.c.l.s4 1983009808
    %v215 = vunpack.c.0.s8 %v214
    %v216 = vlaneseq
    %v217 = vshrl.u32 %v216, 7
    %v218 = vsub.s32 %v215, %v217
    %v219 = vrot.slane %v205, %v218
    %v220 = vcombine.high %v212, %v212
    %v221 = vcombine.high %v219, %v219
    %v222 = vcombine.high %v38, %v38
    %v224 = vunpack.c.l.s4 1983009808
    %v225 = vunpack.c.0.s8 %v224
    %v226 = vlaneseq
    %v227 = vshrl.u32 %v226, 7
    %v228 = vsub.s32 %v225, %v227
    %v229 = vrot.slane %v38, %v228
    %v231 = vunpack.c.l.s4 1983009808
    %v232 = vunpack.c.0.s8 %v231
    %v233 = vlaneseq
    %v234 = vshrl.u32 %v233, 7
    %v235 = vsub.s32 %v232, %v234
    %v236 = vrot.slane %v222, %v235
    %v237 = vcombine.high %v229, %v229
    %v238 = vcombine.high %v236, %v236
    %v239 = vcombine.high %v39, %v39
    %v241 = vunpack.c.l.s4 1983009808
    %v242 = vunpack.c.0.s8 %v241
    %v243 = vlaneseq
    %v244 = vshrl.u32 %v243, 7
    %v245 = vsub.s32 %v242, %v244
    %v246 = vrot.slane %v39, %v245
    %v248 = vunpack.c.l.s4 1983009808
    %v249 = vunpack.c.0.s8 %v248
    %v250 = vlaneseq
    %v251 = vshrl.u32 %v250, 7
    %v252 = vsub.s32 %v249, %v251
    %v253 = vrot.slane %v239, %v252
    %v254 = vcombine.high %v246, %v246
    %v255 = vcombine.high %v253, %v253
    %v256 = vcombine.high %v40, %v40
    %v258 = vunpack.c.l.s4 1983009808
    %v259 = vunpack.c.0.s8 %v258
    %v260 = vlaneseq
    %v261 = vshrl.u32 %v260, 7
    %v262 = vsub.s32 %v259, %v261
    %v263 = vrot.slane %v40, %v262
    %v265 = vunpack.c.l.s4 1983009808
    %v266 = vunpack.c.0.s8 %v265
    %v267 = vlaneseq
    %v268 = vshrl.u32 %v267, 7
    %v269 = vsub.s32 %v266, %v268
    %v270 = vrot.slane %v256, %v269
    %v271 = vcombine.high %v263, %v263
    %v272 = vcombine.high %v270, %v270
    %v273 = vcombine.high %v41, %v41
    %v275 = vunpack.c.l.s4 1983009808
    %v276 = vunpack.c.0.s8 %v275
    %v277 = vlaneseq
    %v278 = vshrl.u32 %v277, 7
    %v279 = vsub.s32 %v276, %v278
    %v280 = vrot.slane %v41, %v279
    %v282 = vunpack.c.l.s4 1983009808
    %v283 = vunpack.c.0.s8 %v282
    %v284 = vlaneseq
    %v285 = vshrl.u32 %v284, 7
    %v286 = vsub.s32 %v283, %v285
    %v287 = vrot.slane %v273, %v286
    %v288 = vcombine.high %v280, %v280
    %v289 = vcombine.high %v287, %v287
    %v291 = vunpack.c.l.s4 1983009808
    %v292 = vunpack.c.0.s8 %v291
    %v293 = vlaneseq
    %v294 = vshrl.u32 %v293, 7
    %v295 = vsub.s32 %v292, %v294
    %v296 = vrot.slane %v42, %v295
    %v297 = vcombine.high %v296, %v296
    %vm298 = vcmask 23552
    %v300 = vsel %vm298, %v35, 0
    %vm302 = vcmask 1040384
    %vm303 = vcmask 1041408
    %v304 = vsel %vm302, 4294967295, 65535
    %v305 = vsel %vm303, %v304, 0
    %v307 = vand.u32 %v195, %v305
    %v310 = vand.u32 %v203, %v305
    %v313 = vand.u32 %v202, %v305
    %v316 = vand.u32 %v204, %v305
    %v319 = vand.u32 %v212, %v305
    %v322 = vand.u32 %v220, %v305
    %v325 = vand.u32 %v219, %v305
    %v328 = vand.u32 %v221, %v305
    %v331 = vand.u32 %v229, %v305
    %v334 = vand.u32 %v237, %v305
    %v337 = vand.u32 %v236, %v305
    %v340 = vand.u32 %v238, %v305
    %v343 = vand.u32 %v246, %v305
    %v346 = vand.u32 %v254, %v305
    %v349 = vand.u32 %v253, %v305
    %v352 = vand.u32 %v255, %v305
    %v355 = vand.u32 %v263, %v305
    %v358 = vand.u32 %v271, %v305
    %v361 = vand.u32 %v270, %v305
    %v364 = vand.u32 %v272, %v305
    %v367 = vand.u32 %v280, %v305
    %v370 = vand.u32 %v288, %v305
    %v373 = vand.u32 %v287, %v305
    %v376 = vand.u32 %v289, %v305
    %v379 = vand.u32 %v296, %v305
    %v382 = vand.u32 %v297, %v305
    %384 = vmatprep.subr.bf16.mxu0 %v310
    %385 = vmatpush1.bf16.msra.mxu0 %v307
    %386 = vmatprep.subr.bf16.mxu0 0
    %387 = vmatpush1.bf16.msra.mxu0 0
    %388 = vmatprep.subr.bf16.mxu0 0
    %389 = vmatpush1.bf16.msra.mxu0 0
    %390 = vmatprep.subr.bf16.mxu0 0
    %391 = vmatpush1.bf16.msra.mxu0 0
    %392 = vmatprep.subr.bf16.mxu0 0
    %393 = vmatpush1.bf16.msra.mxu0 0
    %394 = vmatprep.subr.bf16.mxu0 0
    %395 = vmatpush1.bf16.msra.mxu0 0
    %396 = vmatprep.subr.bf16.mxu0 0
    %397 = vmatpush1.bf16.msra.mxu0 0
    %398 = vmatprep.subr.bf16.mxu0 0
    %399 = vmatpush1.bf16.msra.mxu0 0
    %400 = vmatprep.subr.bf16.mxu0 0
    %401 = vmatpush1.bf16.msra.mxu0 0
    %402 = vmatprep.subr.bf16.mxu0 0
    %403 = vmatpush1.bf16.msra.mxu0 0
    %404 = vmatprep.subr.bf16.mxu0 0
    %405 = vmatpush1.bf16.msra.mxu0 0
    %406 = vmatprep.subr.bf16.mxu0 0
    %407 = vmatpush1.bf16.msra.mxu0 0
    %408 = vmatprep.subr.bf16.mxu0 0
    %409 = vmatpush1.bf16.msra.mxu0 0
    %410 = vmatprep.subr.bf16.mxu0 0
    %411 = vmatpush1.bf16.msra.mxu0 0
    %412 = vmatprep.subr.bf16.mxu0 0
    %413 = vmatpush1.bf16.msra.mxu0 0
    %414 = vmatprep.subr.bf16.mxu0 0
    %415 = vmatpush1.bf16.msra.mxu0 0
    %416 = vmatprep.mubr.bf16.mxu0 0
    %417 = vmatmul.mubr.bf16.gmra.mrb[0].mxu0 %v300
    %v418 = vpop.f32.mrb[0].mxu0
    %v419 = vadd.f32 %v54, %v418
    %v420 = vpop.f32.mrb[0].mxu0
    %v421 = vadd.f32 %v58, %v420
    %v422 = vpop.f32.mrb[0].mxu0
    %v423 = vpop.f32.mrb[0].mxu0
    %424 = vdwg.mxu0
    %425 = vmatprep.subr.bf16.mxu0 %v316
    %426 = vmatpush1.bf16.msra.mxu0 %v313
    %427 = vmatprep.subr.bf16.mxu0 0
    %428 = vmatpush1.bf16.msra.mxu0 0
    %429 = vmatprep.subr.bf16.mxu0 0
    %430 = vmatpush1.bf16.msra.mxu0 0
    %431 = vmatprep.subr.bf16.mxu0 0
    %432 = vmatpush1.bf16.msra.mxu0 0
    %433 = vmatprep.subr.bf16.mxu0 0
    %434 = vmatpush1.bf16.msra.mxu0 0
    %435 = vmatprep.subr.bf16.mxu0 0
    %436 = vmatpush1.bf16.msra.mxu0 0
    %437 = vmatprep.subr.bf16.mxu0 0
    %438 = vmatpush1.bf16.msra.mxu0 0
    %439 = vmatprep.subr.bf16.mxu0 0
    %440 = vmatpush1.bf16.msra.mxu0 0
    %441 = vmatprep.subr.bf16.mxu0 0
    %442 = vmatpush1.bf16.msra.mxu0 0
    %443 = vmatprep.subr.bf16.mxu0 0
    %444 = vmatpush1.bf16.msra.mxu0 0
    %445 = vmatprep.subr.bf16.mxu0 0
    %446 = vmatpush1.bf16.msra.mxu0 0
    %447 = vmatprep.subr.bf16.mxu0 0
    %448 = vmatpush1.bf16.msra.mxu0 0
    %449 = vmatprep.subr.bf16.mxu0 0
    %450 = vmatpush1.bf16.msra.mxu0 0
    %451 = vmatprep.subr.bf16.mxu0 0
    %452 = vmatpush1.bf16.msra.mxu0 0
    %453 = vmatprep.subr.bf16.mxu0 0
    %454 = vmatpush1.bf16.msra.mxu0 0
    %455 = vmatprep.subr.bf16.mxu0 0
    %456 = vmatpush1.bf16.msra.mxu0 0
    %457 = vmatprep.mubr.bf16.mxu0 0
    %458 = vmatmul.mubr.bf16.gmra.mrb[0].mxu0 %v300
    %v459 = vpop.f32.mrb[0].mxu0
    %v460 = vadd.f32 %v62, %v459
    %v461 = vpop.f32.mrb[0].mxu0
    %v462 = vadd.f32 %v66, %v461
    %v463 = vpop.f32.mrb[0].mxu0
    %v464 = vpop.f32.mrb[0].mxu0
    %465 = vdwg.mxu0
    %466 = vmatprep.subr.bf16.mxu0 %v322
    %467 = vmatpush1.bf16.msra.mxu0 %v319
    %468 = vmatprep.subr.bf16.mxu0 0
    %469 = vmatpush1.bf16.msra.mxu0 0
    %470 = vmatprep.subr.bf16.mxu0 0
    %471 = vmatpush1.bf16.msra.mxu0 0
    %472 = vmatprep.subr.bf16.mxu0 0
    %473 = vmatpush1.bf16.msra.mxu0 0
    %474 = vmatprep.subr.bf16.mxu0 0
    %475 = vmatpush1.bf16.msra.mxu0 0
    %476 = vmatprep.subr.bf16.mxu0 0
    %477 = vmatpush1.bf16.msra.mxu0 0
    %478 = vmatprep.subr.bf16.mxu0 0
    %479 = vmatpush1.bf16.msra.mxu0 0
    %480 = vmatprep.subr.bf16.mxu0 0
    %481 = vmatpush1.bf16.msra.mxu0 0
    %482 = vmatprep.subr.bf16.mxu0 0
    %483 = vmatpush1.bf16.msra.mxu0 0
    %484 = vmatprep.subr.bf16.mxu0 0
    %485 = vmatpush1.bf16.msra.mxu0 0
    %486 = vmatprep.subr.bf16.mxu0 0
    %487 = vmatpush1.bf16.msra.mxu0 0
    %488 = vmatprep.subr.bf16.mxu0 0
    %489 = vmatpush1.bf16.msra.mxu0 0
    %490 = vmatprep.subr.bf16.mxu0 0
    %491 = vmatpush1.bf16.msra.mxu0 0
    %492 = vmatprep.subr.bf16.mxu0 0
    %493 = vmatpush1.bf16.msra.mxu0 0
    %494 = vmatprep.subr.bf16.mxu0 0
    %495 = vmatpush1.bf16.msra.mxu0 0
    %496 = vmatprep.subr.bf16.mxu0 0
    %497 = vmatpush1.bf16.msra.mxu0 0
    %498 = vmatprep.mubr.bf16.mxu0 0
    %499 = vmatmul.mubr.bf16.gmra.mrb[0].mxu0 %v300
    %v500 = vpop.f32.mrb[0].mxu0
    %v501 = vadd.f32 %v70, %v500
    %v502 = vpop.f32.mrb[0].mxu0
    %v503 = vadd.f32 %v74, %v502
    %v504 = vpop.f32.mrb[0].mxu0
    %v505 = vpop.f32.mrb[0].mxu0
    %506 = vdwg.mxu0
    %507 = vmatprep.subr.bf16.mxu0 %v328
    %508 = vmatpush1.bf16.msra.mxu0 %v325
    %509 = vmatprep.subr.bf16.mxu0 0
    %510 = vmatpush1.bf16.msra.mxu0 0
    %511 = vmatprep.subr.bf16.mxu0 0
    %512 = vmatpush1.bf16.msra.mxu0 0
    %513 = vmatprep.subr.bf16.mxu0 0
    %514 = vmatpush1.bf16.msra.mxu0 0
    %515 = vmatprep.subr.bf16.mxu0 0
    %516 = vmatpush1.bf16.msra.mxu0 0
    %517 = vmatprep.subr.bf16.mxu0 0
    %518 = vmatpush1.bf16.msra.mxu0 0
    %519 = vmatprep.subr.bf16.mxu0 0
    %520 = vmatpush1.bf16.msra.mxu0 0
    %521 = vmatprep.subr.bf16.mxu0 0
    %522 = vmatpush1.bf16.msra.mxu0 0
    %523 = vmatprep.subr.bf16.mxu0 0
    %524 = vmatpush1.bf16.msra.mxu0 0
    %525 = vmatprep.subr.bf16.mxu0 0
    %526 = vmatpush1.bf16.msra.mxu0 0
    %527 = vmatprep.subr.bf16.mxu0 0
    %528 = vmatpush1.bf16.msra.mxu0 0
    %529 = vmatprep.subr.bf16.mxu0 0
    %530 = vmatpush1.bf16.msra.mxu0 0
    %531 = vmatprep.subr.bf16.mxu0 0
    %532 = vmatpush1.bf16.msra.mxu0 0
    %533 = vmatprep.subr.bf16.mxu0 0
    %534 = vmatpush1.bf16.msra.mxu0 0
    %535 = vmatprep.subr.bf16.mxu0 0
    %536 = vmatpush1.bf16.msra.mxu0 0
    %537 = vmatprep.subr.bf16.mxu0 0
    %538 = vmatpush1.bf16.msra.mxu0 0
    %539 = vmatprep.mubr.bf16.mxu0 0
    %540 = vmatmul.mubr.bf16.gmra.mrb[0].mxu0 %v300
    %v541 = vpop.f32.mrb[0].mxu0
    %v542 = vadd.f32 %v78, %v541
    %v543 = vpop.f32.mrb[0].mxu0
    %v544 = vadd.f32 %v82, %v543
    %v545 = vpop.f32.mrb[0].mxu0
    %v546 = vpop.f32.mrb[0].mxu0
    %547 = vdwg.mxu0
    %548 = vmatprep.subr.bf16.mxu0 %v334
    %549 = vmatpush1.bf16.msra.mxu0 %v331
    %550 = vmatprep.subr.bf16.mxu0 0
    %551 = vmatpush1.bf16.msra.mxu0 0
    %552 = vmatprep.subr.bf16.mxu0 0
    %553 = vmatpush1.bf16.msra.mxu0 0
    %554 = vmatprep.subr.bf16.mxu0 0
    %555 = vmatpush1.bf16.msra.mxu0 0
    %556 = vmatprep.subr.bf16.mxu0 0
    %557 = vmatpush1.bf16.msra.mxu0 0
    %558 = vmatprep.subr.bf16.mxu0 0
    %559 = vmatpush1.bf16.msra.mxu0 0
    %560 = vmatprep.subr.bf16.mxu0 0
    %561 = vmatpush1.bf16.msra.mxu0 0
    %562 = vmatprep.subr.bf16.mxu0 0
    %563 = vmatpush1.bf16.msra.mxu0 0
    %564 = vmatprep.subr.bf16.mxu0 0
    %565 = vmatpush1.bf16.msra.mxu0 0
    %566 = vmatprep.subr.bf16.mxu0 0
    %567 = vmatpush1.bf16.msra.mxu0 0
    %568 = vmatprep.subr.bf16.mxu0 0
    %569 = vmatpush1.bf16.msra.mxu0 0
    %570 = vmatprep.subr.bf16.mxu0 0
    %571 = vmatpush1.bf16.msra.mxu0 0
    %572 = vmatprep.subr.bf16.mxu0 0
    %573 = vmatpush1.bf16.msra.mxu0 0
    %574 = vmatprep.subr.bf16.mxu0 0
    %575 = vmatpush1.bf16.msra.mxu0 0
    %576 = vmatprep.subr.bf16.mxu0 0
    %577 = vmatpush1.bf16.msra.mxu0 0
    %578 = vmatprep.subr.bf16.mxu0 0
    %579 = vmatpush1.bf16.msra.mxu0 0
    %580 = vmatprep.mubr.bf16.mxu0 0
    %581 = vmatmul.mubr.bf16.gmra.mrb[0].mxu0 %v300
    %v582 = vpop.f32.mrb[0].mxu0
    %v583 = vadd.f32 %v86, %v582
    %v584 = vpop.f32.mrb[0].mxu0
    %v585 = vadd.f32 %v90, %v584
    %v586 = vpop.f32.mrb[0].mxu0
    %v587 = vpop.f32.mrb[0].mxu0
    %588 = vdwg.mxu0
    %589 = vmatprep.subr.bf16.mxu0 %v340
    %590 = vmatpush1.bf16.msra.mxu0 %v337
    %591 = vmatprep.subr.bf16.mxu0 0
    %592 = vmatpush1.bf16.msra.mxu0 0
    %593 = vmatprep.subr.bf16.mxu0 0
    %594 = vmatpush1.bf16.msra.mxu0 0
    %595 = vmatprep.subr.bf16.mxu0 0
    %596 = vmatpush1.bf16.msra.mxu0 0
    %597 = vmatprep.subr.bf16.mxu0 0
    %598 = vmatpush1.bf16.msra.mxu0 0
    %599 = vmatprep.subr.bf16.mxu0 0
    %600 = vmatpush1.bf16.msra.mxu0 0
    %601 = vmatprep.subr.bf16.mxu0 0
    %602 = vmatpush1.bf16.msra.mxu0 0
    %603 = vmatprep.subr.bf16.mxu0 0
    %604 = vmatpush1.bf16.msra.mxu0 0
    %605 = vmatprep.subr.bf16.mxu0 0
    %606 = vmatpush1.bf16.msra.mxu0 0
    %607 = vmatprep.subr.bf16.mxu0 0
    %608 = vmatpush1.bf16.msra.mxu0 0
    %609 = vmatprep.subr.bf16.mxu0 0
    %610 = vmatpush1.bf16.msra.mxu0 0
    %611 = vmatprep.subr.bf16.mxu0 0
    %612 = vmatpush1.bf16.msra.mxu0 0
    %613 = vmatprep.subr.bf16.mxu0 0
    %614 = vmatpush1.bf16.msra.mxu0 0
    %615 = vmatprep.subr.bf16.mxu0 0
    %616 = vmatpush1.bf16.msra.mxu0 0
    %617 = vmatprep.subr.bf16.mxu0 0
    %618 = vmatpush1.bf16.msra.mxu0 0
    %619 = vmatprep.subr.bf16.mxu0 0
    %620 = vmatpush1.bf16.msra.mxu0 0
    %621 = vmatprep.mubr.bf16.mxu0 0
    %622 = vmatmul.mubr.bf16.gmra.mrb[0].mxu0 %v300
    %v623 = vpop.f32.mrb[0].mxu0
    %v624 = vadd.f32 %v94, %v623
    %v625 = vpop.f32.mrb[0].mxu0
    %v626 = vadd.f32 %v98, %v625
    %v627 = vpop.f32.mrb[0].mxu0
    %v628 = vpop.f32.mrb[0].mxu0
    %629 = vdwg.mxu0
    %630 = vmatprep.subr.bf16.mxu0 %v346
    %631 = vmatpush1.bf16.msra.mxu0 %v343
    %632 = vmatprep.subr.bf16.mxu0 0
    %633 = vmatpush1.bf16.msra.mxu0 0
    %634 = vmatprep.subr.bf16.mxu0 0
    %635 = vmatpush1.bf16.msra.mxu0 0
    %636 = vmatprep.subr.bf16.mxu0 0
    %637 = vmatpush1.bf16.msra.mxu0 0
    %638 = vmatprep.subr.bf16.mxu0 0
    %639 = vmatpush1.bf16.msra.mxu0 0
    %640 = vmatprep.subr.bf16.mxu0 0
    %641 = vmatpush1.bf16.msra.mxu0 0
    %642 = vmatprep.subr.bf16.mxu0 0
    %643 = vmatpush1.bf16.msra.mxu0 0
    %644 = vmatprep.subr.bf16.mxu0 0
    %645 = vmatpush1.bf16.msra.mxu0 0
    %646 = vmatprep.subr.bf16.mxu0 0
    %647 = vmatpush1.bf16.msra.mxu0 0
    %648 = vmatprep.subr.bf16.mxu0 0
    %649 = vmatpush1.bf16.msra.mxu0 0
    %650 = vmatprep.subr.bf16.mxu0 0
    %651 = vmatpush1.bf16.msra.mxu0 0
    %652 = vmatprep.subr.bf16.mxu0 0
    %653 = vmatpush1.bf16.msra.mxu0 0
    %654 = vmatprep.subr.bf16.mxu0 0
    %655 = vmatpush1.bf16.msra.mxu0 0
    %656 = vmatprep.subr.bf16.mxu0 0
    %657 = vmatpush1.bf16.msra.mxu0 0
    %658 = vmatprep.subr.bf16.mxu0 0
    %659 = vmatpush1.bf16.msra.mxu0 0
    %660 = vmatprep.subr.bf16.mxu0 0
    %661 = vmatpush1.bf16.msra.mxu0 0
    %662 = vmatprep.mubr.bf16.mxu0 0
    %663 = vmatmul.mubr.bf16.gmra.mrb[0].mxu0 %v300
    %v664 = vpop.f32.mrb[0].mxu0
    %v665 = vadd.f32 %v102, %v664
    %v666 = vpop.f32.mrb[0].mxu0
    %v667 = vadd.f32 %v106, %v666
    %v668 = vpop.f32.mrb[0].mxu0
    %v669 = vpop.f32.mrb[0].mxu0
    %670 = vdwg.mxu0
    %671 = vmatprep.subr.bf16.mxu0 %v352
    %672 = vmatpush1.bf16.msra.mxu0 %v349
    %673 = vmatprep.subr.bf16.mxu0 0
    %674 = vmatpush1.bf16.msra.mxu0 0
    %675 = vmatprep.subr.bf16.mxu0 0
    %676 = vmatpush1.bf16.msra.mxu0 0
    %677 = vmatprep.subr.bf16.mxu0 0
    %678 = vmatpush1.bf16.msra.mxu0 0
    %679 = vmatprep.subr.bf16.mxu0 0
    %680 = vmatpush1.bf16.msra.mxu0 0
    %681 = vmatprep.subr.bf16.mxu0 0
    %682 = vmatpush1.bf16.msra.mxu0 0
    %683 = vmatprep.subr.bf16.mxu0 0
    %684 = vmatpush1.bf16.msra.mxu0 0
    %685 = vmatprep.subr.bf16.mxu0 0
    %686 = vmatpush1.bf16.msra.mxu0 0
    %687 = vmatprep.subr.bf16.mxu0 0
    %688 = vmatpush1.bf16.msra.mxu0 0
    %689 = vmatprep.subr.bf16.mxu0 0
    %690 = vmatpush1.bf16.msra.mxu0 0
    %691 = vmatprep.subr.bf16.mxu0 0
    %692 = vmatpush1.bf16.msra.mxu0 0
    %693 = vmatprep.subr.bf16.mxu0 0
    %694 = vmatpush1.bf16.msra.mxu0 0
    %695 = vmatprep.subr.bf16.mxu0 0
    %696 = vmatpush1.bf16.msra.mxu0 0
    %697 = vmatprep.subr.bf16.mxu0 0
    %698 = vmatpush1.bf16.msra.mxu0 0
    %699 = vmatprep.subr.bf16.mxu0 0
    %700 = vmatpush1.bf16.msra.mxu0 0
    %701 = vmatprep.subr.bf16.mxu0 0
    %702 = vmatpush1.bf16.msra.mxu0 0
    %703 = vmatprep.mubr.bf16.mxu0 0
    %704 = vmatmul.mubr.bf16.gmra.mrb[0].mxu0 %v300
    %v705 = vpop.f32.mrb[0].mxu0
    %v706 = vadd.f32 %v110, %v705
    %v707 = vpop.f32.mrb[0].mxu0
    %v708 = vadd.f32 %v114, %v707
    %v709 = vpop.f32.mrb[0].mxu0
    %v710 = vpop.f32.mrb[0].mxu0
    %711 = vdwg.mxu0
    %712 = vmatprep.subr.bf16.mxu0 %v358
    %713 = vmatpush1.bf16.msra.mxu0 %v355
    %714 = vmatprep.subr.bf16.mxu0 0
    %715 = vmatpush1.bf16.msra.mxu0 0
    %716 = vmatprep.subr.bf16.mxu0 0
    %717 = vmatpush1.bf16.msra.mxu0 0
    %718 = vmatprep.subr.bf16.mxu0 0
    %719 = vmatpush1.bf16.msra.mxu0 0
    %720 = vmatprep.subr.bf16.mxu0 0
    %721 = vmatpush1.bf16.msra.mxu0 0
    %722 = vmatprep.subr.bf16.mxu0 0
    %723 = vmatpush1.bf16.msra.mxu0 0
    %724 = vmatprep.subr.bf16.mxu0 0
    %725 = vmatpush1.bf16.msra.mxu0 0
    %726 = vmatprep.subr.bf16.mxu0 0
    %727 = vmatpush1.bf16.msra.mxu0 0
    %728 = vmatprep.subr.bf16.mxu0 0
    %729 = vmatpush1.bf16.msra.mxu0 0
    %730 = vmatprep.subr.bf16.mxu0 0
    %731 = vmatpush1.bf16.msra.mxu0 0
    %732 = vmatprep.subr.bf16.mxu0 0
    %733 = vmatpush1.bf16.msra.mxu0 0
    %734 = vmatprep.subr.bf16.mxu0 0
    %735 = vmatpush1.bf16.msra.mxu0 0
    %736 = vmatprep.subr.bf16.mxu0 0
    %737 = vmatpush1.bf16.msra.mxu0 0
    %738 = vmatprep.subr.bf16.mxu0 0
    %739 = vmatpush1.bf16.msra.mxu0 0
    %740 = vmatprep.subr.bf16.mxu0 0
    %741 = vmatpush1.bf16.msra.mxu0 0
    %742 = vmatprep.subr.bf16.mxu0 0
    %743 = vmatpush1.bf16.msra.mxu0 0
    %744 = vmatprep.mubr.bf16.mxu0 0
    %745 = vmatmul.mubr.bf16.gmra.mrb[0].mxu0 %v300
    %v746 = vpop.f32.mrb[0].mxu0
    %v747 = vadd.f32 %v118, %v746
    %v748 = vpop.f32.mrb[0].mxu0
    %v749 = vadd.f32 %v122, %v748
    %v750 = vpop.f32.mrb[0].mxu0
    %v751 = vpop.f32.mrb[0].mxu0
    %752 = vdwg.mxu0
    %753 = vmatprep.subr.bf16.mxu0 %v364
    %754 = vmatpush1.bf16.msra.mxu0 %v361
    %755 = vmatprep.subr.bf16.mxu0 0
    %756 = vmatpush1.bf16.msra.mxu0 0
    %757 = vmatprep.subr.bf16.mxu0 0
    %758 = vmatpush1.bf16.msra.mxu0 0
    %759 = vmatprep.subr.bf16.mxu0 0
    %760 = vmatpush1.bf16.msra.mxu0 0
    %761 = vmatprep.subr.bf16.mxu0 0
    %762 = vmatpush1.bf16.msra.mxu0 0
    %763 = vmatprep.subr.bf16.mxu0 0
    %764 = vmatpush1.bf16.msra.mxu0 0
    %765 = vmatprep.subr.bf16.mxu0 0
    %766 = vmatpush1.bf16.msra.mxu0 0
    %767 = vmatprep.subr.bf16.mxu0 0
    %768 = vmatpush1.bf16.msra.mxu0 0
    %769 = vmatprep.subr.bf16.mxu0 0
    %770 = vmatpush1.bf16.msra.mxu0 0
    %771 = vmatprep.subr.bf16.mxu0 0
    %772 = vmatpush1.bf16.msra.mxu0 0
    %773 = vmatprep.subr.bf16.mxu0 0
    %774 = vmatpush1.bf16.msra.mxu0 0
    %775 = vmatprep.subr.bf16.mxu0 0
    %776 = vmatpush1.bf16.msra.mxu0 0
    %777 = vmatprep.subr.bf16.mxu0 0
    %778 = vmatpush1.bf16.msra.mxu0 0
    %779 = vmatprep.subr.bf16.mxu0 0
    %780 = vmatpush1.bf16.msra.mxu0 0
    %781 = vmatprep.subr.bf16.mxu0 0
    %782 = vmatpush1.bf16.msra.mxu0 0
    %783 = vmatprep.subr.bf16.mxu0 0
    %784 = vmatpush1.bf16.msra.mxu0 0
    %785 = vmatprep.mubr.bf16.mxu0 0
    %786 = vmatmul.mubr.bf16.gmra.mrb[0].mxu0 %v300
    %v787 = vpop.f32.mrb[0].mxu0
    %v788 = vadd.f32 %v126, %v787
    %v789 = vpop.f32.mrb[0].mxu0
    %v790 = vadd.f32 %v130, %v789
    %v791 = vpop.f32.mrb[0].mxu0
    %v792 = vpop.f32.mrb[0].mxu0
    %793 = vdwg.mxu0
    %794 = vmatprep.subr.bf16.mxu0 %v370
    %795 = vmatpush1.bf16.msra.mxu0 %v367
    %796 = vmatprep.subr.bf16.mxu0 0
    %797 = vmatpush1.bf16.msra.mxu0 0
    %798 = vmatprep.subr.bf16.mxu0 0
    %799 = vmatpush1.bf16.msra.mxu0 0
    %800 = vmatprep.subr.bf16.mxu0 0
    %801 = vmatpush1.bf16.msra.mxu0 0
    %802 = vmatprep.subr.bf16.mxu0 0
    %803 = vmatpush1.bf16.msra.mxu0 0
    %804 = vmatprep.subr.bf16.mxu0 0
    %805 = vmatpush1.bf16.msra.mxu0 0
    %806 = vmatprep.subr.bf16.mxu0 0
    %807 = vmatpush1.bf16.msra.mxu0 0
    %808 = vmatprep.subr.bf16.mxu0 0
    %809 = vmatpush1.bf16.msra.mxu0 0
    %810 = vmatprep.subr.bf16.mxu0 0
    %811 = vmatpush1.bf16.msra.mxu0 0
    %812 = vmatprep.subr.bf16.mxu0 0
    %813 = vmatpush1.bf16.msra.mxu0 0
    %814 = vmatprep.subr.bf16.mxu0 0
    %815 = vmatpush1.bf16.msra.mxu0 0
    %816 = vmatprep.subr.bf16.mxu0 0
    %817 = vmatpush1.bf16.msra.mxu0 0
    %818 = vmatprep.subr.bf16.mxu0 0
    %819 = vmatpush1.bf16.msra.mxu0 0
    %820 = vmatprep.subr.bf16.mxu0 0
    %821 = vmatpush1.bf16.msra.mxu0 0
    %822 = vmatprep.subr.bf16.mxu0 0
    %823 = vmatpush1.bf16.msra.mxu0 0
    %824 = vmatprep.subr.bf16.mxu0 0
    %825 = vmatpush1.bf16.msra.mxu0 0
    %826 = vmatprep.mubr.bf16.mxu0 0
    %827 = vmatmul.mubr.bf16.gmra.mrb[0].mxu0 %v300
    %v828 = vpop.f32.mrb[0].mxu0
    %v829 = vadd.f32 %v134, %v828
    %v830 = vpop.f32.mrb[0].mxu0
    %v831 = vadd.f32 %v138, %v830
    %v832 = vpop.f32.mrb[0].mxu0
    %v833 = vpop.f32.mrb[0].mxu0
    %834 = vdwg.mxu0
    %835 = vmatprep.subr.bf16.mxu0 %v376
    %836 = vmatpush1.bf16.msra.mxu0 %v373
    %837 = vmatprep.subr.bf16.mxu0 0
    %838 = vmatpush1.bf16.msra.mxu0 0
    %839 = vmatprep.subr.bf16.mxu0 0
    %840 = vmatpush1.bf16.msra.mxu0 0
    %841 = vmatprep.subr.bf16.mxu0 0
    %842 = vmatpush1.bf16.msra.mxu0 0
    %843 = vmatprep.subr.bf16.mxu0 0
    %844 = vmatpush1.bf16.msra.mxu0 0
    %845 = vmatprep.subr.bf16.mxu0 0
    %846 = vmatpush1.bf16.msra.mxu0 0
    %847 = vmatprep.subr.bf16.mxu0 0
    %848 = vmatpush1.bf16.msra.mxu0 0
    %849 = vmatprep.subr.bf16.mxu0 0
    %850 = vmatpush1.bf16.msra.mxu0 0
    %851 = vmatprep.subr.bf16.mxu0 0
    %852 = vmatpush1.bf16.msra.mxu0 0
    %853 = vmatprep.subr.bf16.mxu0 0
    %854 = vmatpush1.bf16.msra.mxu0 0
    %855 = vmatprep.subr.bf16.mxu0 0
    %856 = vmatpush1.bf16.msra.mxu0 0
    %857 = vmatprep.subr.bf16.mxu0 0
    %858 = vmatpush1.bf16.msra.mxu0 0
    %859 = vmatprep.subr.bf16.mxu0 0
    %860 = vmatpush1.bf16.msra.mxu0 0
    %861 = vmatprep.subr.bf16.mxu0 0
    %862 = vmatpush1.bf16.msra.mxu0 0
    %863 = vmatprep.subr.bf16.mxu0 0
    %864 = vmatpush1.bf16.msra.mxu0 0
    %865 = vmatprep.subr.bf16.mxu0 0
    %866 = vmatpush1.bf16.msra.mxu0 0
    %867 = vmatprep.mubr.bf16.mxu0 0
    %868 = vmatmul.mubr.bf16.gmra.mrb[0].mxu0 %v300
    %v869 = vpop.f32.mrb[0].mxu0
    %v870 = vadd.f32 %v142, %v869
    %v871 = vpop.f32.mrb[0].mxu0
    %v872 = vadd.f32 %v146, %v871
    %v873 = vpop.f32.mrb[0].mxu0
    %v874 = vpop.f32.mrb[0].mxu0
    %875 = vdwg.mxu0
    %876 = vmatprep.subr.bf16.mxu0 %v382
    %877 = vmatpush1.bf16.msra.mxu0 %v379
    %878 = vmatprep.subr.bf16.mxu0 0
    %879 = vmatpush1.bf16.msra.mxu0 0
    %880 = vmatprep.subr.bf16.mxu0 0
    %881 = vmatpush1.bf16.msra.mxu0 0
    %882 = vmatprep.subr.bf16.mxu0 0
    %883 = vmatpush1.bf16.msra.mxu0 0
    %884 = vmatprep.subr.bf16.mxu0 0
    %885 = vmatpush1.bf16.msra.mxu0 0
    %886 = vmatprep.subr.bf16.mxu0 0
    %887 = vmatpush1.bf16.msra.mxu0 0
    %888 = vmatprep.subr.bf16.mxu0 0
    %889 = vmatpush1.bf16.msra.mxu0 0
    %890 = vmatprep.subr.bf16.mxu0 0
    %891 = vmatpush1.bf16.msra.mxu0 0
    %892 = vmatprep.subr.bf16.mxu0 0
    %893 = vmatpush1.bf16.msra.mxu0 0
    %894 = vmatprep.subr.bf16.mxu0 0
    %895 = vmatpush1.bf16.msra.mxu0 0
    %896 = vmatprep.subr.bf16.mxu0 0
    %897 = vmatpush1.bf16.msra.mxu0 0
    %898 = vmatprep.subr.bf16.mxu0 0
    %899 = vmatpush1.bf16.msra.mxu0 0
    %900 = vmatprep.subr.bf16.mxu0 0
    %901 = vmatpush1.bf16.msra.mxu0 0
    %902 = vmatprep.subr.bf16.mxu0 0
    %903 = vmatpush1.bf16.msra.mxu0 0
    %904 = vmatprep.subr.bf16.mxu0 0
    %905 = vmatpush1.bf16.msra.mxu0 0
    %906 = vmatprep.subr.bf16.mxu0 0
    %907 = vmatpush1.bf16.msra.mxu0 0
    %908 = vmatprep.mubr.bf16.mxu0 0
    %909 = vmatmul.mubr.bf16.gmra.mrb[0].mxu0 %v300
    %v910 = vpop.f32.mrb[0].mxu0
    %v911 = vadd.f32 %v150, %v910
    %v912 = vpop.f32.mrb[0].mxu0
    %v913 = vadd.f32 %v154, %v912
    %v914 = vpop.f32.mrb[0].mxu0
    %v915 = vpop.f32.mrb[0].mxu0
    %916 = vdwg.mxu0
    %v917 = vmax.f32 %v419, 0.0
    %v918 = vmax.f32 %v421, 0.0
    %v919 = vmax.f32 %v460, 0.0
    %v920 = vmax.f32 %v462, 0.0
    %v921 = vmax.f32 %v501, 0.0
    %v922 = vmax.f32 %v503, 0.0
    %v923 = vmax.f32 %v542, 0.0
    %v924 = vmax.f32 %v544, 0.0
    %v925 = vmax.f32 %v583, 0.0
    %v926 = vmax.f32 %v585, 0.0
    %v927 = vmax.f32 %v624, 0.0
    %v928 = vmax.f32 %v626, 0.0
    %v929 = vmax.f32 %v665, 0.0
    %v930 = vmax.f32 %v667, 0.0
    %v931 = vmax.f32 %v706, 0.0
    %v932 = vmax.f32 %v708, 0.0
    %v933 = vmax.f32 %v747, 0.0
    %v934 = vmax.f32 %v749, 0.0
    %v935 = vmax.f32 %v788, 0.0
    %v936 = vmax.f32 %v790, 0.0
    %v937 = vmax.f32 %v829, 0.0
    %v938 = vmax.f32 %v831, 0.0
    %v939 = vmax.f32 %v870, 0.0
    %v940 = vmax.f32 %v872, 0.0
    %v941 = vmax.f32 %v911, 0.0
    %v942 = vmax.f32 %v913, 0.0
    %v943 = vpack.c.bf16 %v917, %v917
    %v944 = vpack.c.bf16 %v918, %v918
    %v945 = vpack.c.bf16 %v919, %v919
    %v946 = vpack.c.bf16 %v920, %v920
    %v947 = vpack.c.bf16 %v921, %v921
    %v948 = vpack.c.bf16 %v922, %v922
    %v949 = vpack.c.bf16 %v923, %v923
    %v950 = vpack.c.bf16 %v924, %v924
    %v951 = vpack.c.bf16 %v925, %v925
    %v952 = vpack.c.bf16 %v926, %v926
    %v953 = vpack.c.bf16 %v927, %v927
    %v954 = vpack.c.bf16 %v928, %v928
    %v955 = vpack.c.bf16 %v929, %v929
    %v956 = vpack.c.bf16 %v930, %v930
    %v957 = vpack.c.bf16 %v931, %v931
    %v958 = vpack.c.bf16 %v932, %v932
    %v959 = vpack.c.bf16 %v933, %v933
    %v960 = vpack.c.bf16 %v934, %v934
    %v961 = vpack.c.bf16 %v935, %v935
    %v962 = vpack.c.bf16 %v936, %v936
    %v963 = vpack.c.bf16 %v937, %v937
    %v964 = vpack.c.bf16 %v938, %v938
    %v965 = vpack.c.bf16 %v939, %v939
    %v966 = vpack.c.bf16 %v940, %v940
    %v967 = vpack.c.bf16 %v941, %v941
    %v968 = vpack.c.bf16 %v942, %v942
    %v969 = vld [vmem:[#allocation2] sm:$0xf]
    %v970 = vld [vmem:[#allocation2 + $0x4] sm:$0xf]
    %v971 = vld [vmem:[#allocation2 + $0x8] sm:$0xf]
    %v972 = vld [vmem:[#allocation2 + $0xc] sm:$0xf]
    %v973 = vld [vmem:[#allocation2 + $0x10] sm:$0xf]
    %v974 = vld [vmem:[#allocation2 + $0x14] sm:$0xf]
    %v975 = vld [vmem:[#allocation2 + $0x18] sm:$0xf]
    %v976 = vld [vmem:[#allocation2 + $0x1c] sm:$0xf]
    %v977 = vld [vmem:[#allocation2 + $0x20] sm:$0xf]
    %v978 = vld [vmem:[#allocation2 + $0x24] sm:$0xf]
    %v979 = vld [vmem:[#allocation2 + $0x28] sm:$0xf]
    %v980 = vld [vmem:[#allocation2 + $0x2c] sm:$0xf]
    %v981 = vld [vmem:[#allocation2 + $0x30] sm:$0xf]
    %v982 = vld [vmem:[#allocation2 + $0x34] sm:$0xf]
    %v983 = vld [vmem:[#allocation2 + $0x38] sm:$0xf]
    %v984 = vld [vmem:[#allocation2 + $0x3c] sm:$0xf]
    %v985 = vld [vmem:[#allocation2 + $0x40] sm:$0xf]
    %v986 = vld [vmem:[#allocation2 + $0x44] sm:$0xf]
    %v987 = vld [vmem:[#allocation2 + $0x48] sm:$0xf]
    %v988 = vld [vmem:[#allocation2 + $0x4c] sm:$0xf]
    %v989 = vld [vmem:[#allocation2 + $0x50] sm:$0xf]
    %v990 = vld [vmem:[#allocation2 + $0x54] sm:$0xf]
    %v991 = vld [vmem:[#allocation2 + $0x58] sm:$0xf]
    %v992 = vld [vmem:[#allocation2 + $0x5c] sm:$0xf]
    %v993 = vld [vmem:[#allocation2 + $0x60] sm:$0xf]
    %v994 = vld [vmem:[#allocation2 + $0x64] sm:$0xf]
    %v995 = vld [vmem:[#allocation2 + $0x68] sm:$0xf]
    %v996 = vld [vmem:[#allocation2 + $0x6c] sm:$0xf]
    %v997 = vld [vmem:[#allocation2 + $0x70] sm:$0xf]
    %v998 = vld [vmem:[#allocation2 + $0x74] sm:$0xf]
    %v999 = vld [vmem:[#allocation2 + $0x78] sm:$0xf]
    %v1000 = vld [vmem:[#allocation2 + $0x7c] sm:$0xf]
    %v1001 = vld [vmem:[#allocation2 + $0x80] sm:$0xf]
    %v1002 = vld [vmem:[#allocation2 + $0x84] sm:$0xf]
    %v1003 = vld [vmem:[#allocation2 + $0x88] sm:$0xf]
    %v1004 = vld [vmem:[#allocation2 + $0x8c] sm:$0xf]
    %v1005 = vld [vmem:[#allocation2 + $0x90] sm:$0xf]
    %v1006 = vld [vmem:[#allocation2 + $0x94] sm:$0xf]
    %v1007 = vld [vmem:[#allocation2 + $0x98] sm:$0xf]
    %v1008 = vld [vmem:[#allocation2 + $0x9c] sm:$0xf]
    %v1009 = vld [vmem:[#allocation2 + $0xa0] sm:$0xf]
    %v1010 = vld [vmem:[#allocation2 + $0xa4] sm:$0xf]
    %v1011 = vld [vmem:[#allocation2 + $0xa8] sm:$0xf]
    %v1012 = vld [vmem:[#allocation2 + $0xac] sm:$0xf]
    %v1013 = vld [vmem:[#allocation2 + $0xb0] sm:$0xf]
    %v1014 = vld [vmem:[#allocation2 + $0xb4] sm:$0xf]
    %v1015 = vld [vmem:[#allocation2 + $0xb8] sm:$0xf]
    %v1016 = vld [vmem:[#allocation2 + $0xbc] sm:$0xf]
    %v1017 = vld [vmem:[#allocation2 + $0xc0] sm:$0xf]
    %v1018 = vld [vmem:[#allocation2 + $0xc4] sm:$0xf]
    %v1019 = vld [vmem:[#allocation2 + $0xc8] sm:$0xf]
    %v1020 = vld [vmem:[#allocation2 + $0xcc] sm:$0xf]
    %v1021 = vld [vmem:[#allocation2 + $0xd0] sm:$0xf]
    %v1022 = vld [vmem:[#allocation2 + $0xd4] sm:$0xf]
    %v1023 = vld [vmem:[#allocation2 + $0xd8] sm:$0xf]
    %v1024 = vld [vmem:[#allocation2 + $0xdc] sm:$0xf]
    %v1025 = vld [vmem:[#allocation2 + $0xe0] sm:$0xf]
    %v1026 = vld [vmem:[#allocation2 + $0xe4] sm:$0xf]
    %v1027 = vld [vmem:[#allocation2 + $0xe8] sm:$0xf]
    %v1028 = vld [vmem:[#allocation2 + $0xec] sm:$0xf]
    %v1029 = vld [vmem:[#allocation2 + $0xf0] sm:$0xf]
    %v1030 = vld [vmem:[#allocation2 + $0xf4] sm:$0xf]
    %v1031 = vld [vmem:[#allocation2 + $0xf8] sm:$0xf]
    %v1032 = vld [vmem:[#allocation2 + $0xfc] sm:$0xf]
    %v1033 = vld [vmem:[#allocation2 + $0x100] sm:$0xf]
    %v1034 = vld [vmem:[#allocation2 + $0x104] sm:$0xf]
    %v1035 = vld [vmem:[#allocation2 + $0x108] sm:$0xf]
    %v1036 = vld [vmem:[#allocation2 + $0x10c] sm:$0xf]
    %v1037 = vld [vmem:[#allocation2 + $0x110] sm:$0xf]
    %v1038 = vld [vmem:[#allocation2 + $0x114] sm:$0xf]
    %v1039 = vld [vmem:[#allocation2 + $0x118] sm:$0xf]
    %v1040 = vld [vmem:[#allocation2 + $0x11c] sm:$0xf]
    %v1041 = vld [vmem:[#allocation2 + $0x120] sm:$0xf]
    %v1042 = vld [vmem:[#allocation2 + $0x124] sm:$0xf]
    %v1043 = vld [vmem:[#allocation2 + $0x128] sm:$0xf]
    %v1044 = vld [vmem:[#allocation2 + $0x12c] sm:$0xf]
    %v1045 = vld [vmem:[#allocation2 + $0x130] sm:$0xf]
    %v1046 = vld [vmem:[#allocation2 + $0x134] sm:$0xf]
    %v1047 = vld [vmem:[#allocation2 + $0x138] sm:$0xf]
    %v1048 = vld [vmem:[#allocation2 + $0x13c] sm:$0xf]
    %v1049 = vld [vmem:[#allocation2 + $0x140] sm:$0xf]
    %v1050 = vld [vmem:[#allocation2 + $0x144] sm:$0xf]
    %v1051 = vld [vmem:[#allocation2 + $0x148] sm:$0xf]
    %v1052 = vld [vmem:[#allocation2 + $0x14c] sm:$0xf]
    %v1053 = vld [vmem:[#allocation2 + $0x150] sm:$0xf]
    %v1054 = vld [vmem:[#allocation2 + $0x154] sm:$0xf]
    %v1055 = vld [vmem:[#allocation2 + $0x158] sm:$0xf]
    %v1056 = vld [vmem:[#allocation2 + $0x15c] sm:$0xf]
    %v1057 = vld [vmem:[#allocation2 + $0x160] sm:$0xf]
    %v1058 = vld [vmem:[#allocation2 + $0x164] sm:$0xf]
    %v1059 = vld [vmem:[#allocation2 + $0x168] sm:$0xf]
    %v1060 = vld [vmem:[#allocation2 + $0x16c] sm:$0xf]
    %v1061 = vld [vmem:[#allocation2 + $0x170] sm:$0xf]
    %v1062 = vld [vmem:[#allocation2 + $0x174] sm:$0xf]
    %v1063 = vld [vmem:[#allocation2 + $0x178] sm:$0xf]
    %v1064 = vld [vmem:[#allocation2 + $0x17c] sm:$0xf]
    %v1065 = vld [vmem:[#allocation2 + $0x180] sm:$0xf]
    %v1066 = vld [vmem:[#allocation2 + $0x184] sm:$0xf]
    %v1067 = vld [vmem:[#allocation2 + $0x188] sm:$0xf]
    %v1068 = vld [vmem:[#allocation2 + $0x18c] sm:$0xf]
    %v1069 = vld [vmem:[#allocation2 + $0x190] sm:$0xf]
    %v1070 = vld [vmem:[#allocation2 + $0x194] sm:$0xf]
    %v1071 = vld [vmem:[#allocation2 + $0x198] sm:$0xf]
    %v1072 = vld [vmem:[#allocation2 + $0x19c] sm:$0xf]
    %v1073 = vld [vmem:[#allocation2 + $0x1a0] sm:$0xf]
    %v1074 = vld [vmem:[#allocation2 + $0x1a4] sm:$0xf]
    %v1075 = vld [vmem:[#allocation2 + $0x1a8] sm:$0xf]
    %v1076 = vld [vmem:[#allocation2 + $0x1ac] sm:$0xf]
    %v1077 = vld [vmem:[#allocation2 + $0x1b0] sm:$0xf]
    %v1078 = vld [vmem:[#allocation2 + $0x1b4] sm:$0xf]
    %v1079 = vld [vmem:[#allocation2 + $0x1b8] sm:$0xf]
    %v1080 = vld [vmem:[#allocation2 + $0x1bc] sm:$0xf]
    %v1081 = vld [vmem:[#allocation2 + $0x1c0] sm:$0xf]
    %v1082 = vld [vmem:[#allocation2 + $0x1c4] sm:$0xf]
    %v1083 = vld [vmem:[#allocation2 + $0x1c8] sm:$0xf]
    %v1084 = vld [vmem:[#allocation2 + $0x1cc] sm:$0xf]
    %v1085 = vld [vmem:[#allocation2 + $0x1d0] sm:$0xf]
    %v1086 = vld [vmem:[#allocation2 + $0x1d4] sm:$0xf]
    %v1087 = vld [vmem:[#allocation2 + $0x1d8] sm:$0xf]
    %v1088 = vld [vmem:[#allocation2 + $0x1dc] sm:$0xf]
    %v1089 = vld [vmem:[#allocation2 + $0x1e0] sm:$0xf]
    %v1090 = vld [vmem:[#allocation2 + $0x1e4] sm:$0xf]
    %v1091 = vld [vmem:[#allocation2 + $0x1e8] sm:$0xf]
    %v1092 = vld [vmem:[#allocation2 + $0x1ec] sm:$0xf]
    %v1093 = vld [vmem:[#allocation2 + $0x1f0] sm:$0xf]
    %v1094 = vld [vmem:[#allocation2 + $0x1f4] sm:$0xf]
    %v1095 = vld [vmem:[#allocation2 + $0x1f8] sm:$0xf]
    %v1096 = vld [vmem:[#allocation2 + $0x1fc] sm:$0xf]
    %v1097 = vld [vmem:[#allocation2 + $0x200] sm:$0xf]
    %v1098 = vld [vmem:[#allocation2 + $0x204] sm:$0xf]
    %v1099 = vld [vmem:[#allocation2 + $0x208] sm:$0xf]
    %v1100 = vld [vmem:[#allocation2 + $0x20c] sm:$0xf]
    %v1101 = vld [vmem:[#allocation2 + $0x210] sm:$0xf]
    %v1102 = vld [vmem:[#allocation2 + $0x214] sm:$0xf]
    %v1103 = vld [vmem:[#allocation2 + $0x218] sm:$0xf]
    %v1104 = vld [vmem:[#allocation2 + $0x21c] sm:$0xf]
    %v1105 = vld [vmem:[#allocation2 + $0x220] sm:$0xf]
    %v1106 = vld [vmem:[#allocation2 + $0x224] sm:$0xf]
    %v1107 = vld [vmem:[#allocation2 + $0x228] sm:$0xf]
    %v1108 = vld [vmem:[#allocation2 + $0x22c] sm:$0xf]
    %v1109 = vld [vmem:[#allocation2 + $0x230] sm:$0xf]
    %v1110 = vld [vmem:[#allocation2 + $0x234] sm:$0xf]
    %v1111 = vld [vmem:[#allocation2 + $0x238] sm:$0xf]
    %v1112 = vld [vmem:[#allocation2 + $0x23c] sm:$0xf]
    %v1113 = vld [vmem:[#allocation2 + $0x240] sm:$0xf]
    %v1114 = vld [vmem:[#allocation2 + $0x244] sm:$0xf]
    %v1115 = vld [vmem:[#allocation2 + $0x248] sm:$0xf]
    %v1116 = vld [vmem:[#allocation2 + $0x24c] sm:$0xf]
    %v1117 = vld [vmem:[#allocation2 + $0x250] sm:$0xf]
    %v1118 = vld [vmem:[#allocation2 + $0x254] sm:$0xf]
    %v1119 = vld [vmem:[#allocation2 + $0x258] sm:$0xf]
    %v1120 = vld [vmem:[#allocation2 + $0x25c] sm:$0xf]
    %v1121 = vld [vmem:[#allocation2 + $0x260] sm:$0xf]
    %v1122 = vld [vmem:[#allocation2 + $0x264] sm:$0xf]
    %v1123 = vld [vmem:[#allocation2 + $0x268] sm:$0xf]
    %v1124 = vld [vmem:[#allocation2 + $0x26c] sm:$0xf]
    %v1125 = vld [vmem:[#allocation2 + $0x270] sm:$0xf]
    %v1126 = vld [vmem:[#allocation2 + $0x274] sm:$0xf]
    %v1127 = vld [vmem:[#allocation2 + $0x278] sm:$0xf]
    %v1128 = vld [vmem:[#allocation2 + $0x27c] sm:$0xf]
    %v1129 = vld [vmem:[#allocation2 + $0x280] sm:$0xf]
    %v1130 = vld [vmem:[#allocation2 + $0x284] sm:$0xf]
    %v1131 = vld [vmem:[#allocation2 + $0x288] sm:$0xf]
    %v1132 = vld [vmem:[#allocation2 + $0x28c] sm:$0xf]
    %v1133 = vld [vmem:[#allocation2 + $0x290] sm:$0xf]
    %v1134 = vld [vmem:[#allocation2 + $0x294] sm:$0xf]
    %v1135 = vld [vmem:[#allocation2 + $0x298] sm:$0xf]
    %v1136 = vld [vmem:[#allocation2 + $0x29c] sm:$0xf]
    %v1137 = vld [vmem:[#allocation2 + $0x2a0] sm:$0xf]
    %v1138 = vld [vmem:[#allocation2 + $0x2a4] sm:$0xf]
    %v1139 = vld [vmem:[#allocation2 + $0x2a8] sm:$0xf]
    %v1140 = vld [vmem:[#allocation2 + $0x2ac] sm:$0xf]
    %v1141 = vld [vmem:[#allocation2 + $0x2b0] sm:$0xf]
    %v1142 = vld [vmem:[#allocation2 + $0x2b4] sm:$0xf]
    %v1143 = vld [vmem:[#allocation2 + $0x2b8] sm:$0xf]
    %v1144 = vld [vmem:[#allocation2 + $0x2bc] sm:$0xf]
    %v1145 = vld [vmem:[#allocation2 + $0x2c0] sm:$0xf]
    %v1146 = vld [vmem:[#allocation2 + $0x2c4] sm:$0xf]
    %v1147 = vld [vmem:[#allocation2 + $0x2c8] sm:$0xf]
    %v1148 = vld [vmem:[#allocation2 + $0x2cc] sm:$0xf]
    %v1149 = vld [vmem:[#allocation2 + $0x2d0] sm:$0xf]
    %v1150 = vld [vmem:[#allocation2 + $0x2d4] sm:$0xf]
    %v1151 = vld [vmem:[#allocation2 + $0x2d8] sm:$0xf]
    %v1152 = vld [vmem:[#allocation2 + $0x2dc] sm:$0xf]
    %v1153 = vld [vmem:[#allocation2 + $0x2e0] sm:$0xf]
    %v1154 = vld [vmem:[#allocation2 + $0x2e4] sm:$0xf]
    %v1155 = vld [vmem:[#allocation2 + $0x2e8] sm:$0xf]
    %v1156 = vld [vmem:[#allocation2 + $0x2ec] sm:$0xf]
    %v1157 = vld [vmem:[#allocation2 + $0x2f0] sm:$0xf]
    %v1158 = vld [vmem:[#allocation2 + $0x2f4] sm:$0xf]
    %v1159 = vld [vmem:[#allocation2 + $0x2f8] sm:$0xf]
    %v1160 = vld [vmem:[#allocation2 + $0x2fc] sm:$0xf]
    %v1161 = vld [vmem:[#allocation2 + $0x300] sm:$0xf]
    %v1162 = vld [vmem:[#allocation2 + $0x304] sm:$0xf]
    %v1163 = vld [vmem:[#allocation2 + $0x308] sm:$0xf]
    %v1164 = vld [vmem:[#allocation2 + $0x30c] sm:$0xf]
    %v1165 = vld [vmem:[#allocation2 + $0x310] sm:$0xf]
    %v1166 = vld [vmem:[#allocation2 + $0x314] sm:$0xf]
    %v1167 = vld [vmem:[#allocation2 + $0x318] sm:$0xf]
    %v1168 = vld [vmem:[#allocation2 + $0x31c] sm:$0xf]
    %v1169 = vld [vmem:[#allocation2 + $0x320] sm:$0xf]
    %v1170 = vld [vmem:[#allocation2 + $0x324] sm:$0xf]
    %v1171 = vld [vmem:[#allocation2 + $0x328] sm:$0xf]
    %v1172 = vld [vmem:[#allocation2 + $0x32c] sm:$0xf]
    %v1173 = vld [vmem:[#allocation2 + $0x330] sm:$0xf]
    %v1174 = vld [vmem:[#allocation2 + $0x334] sm:$0xf]
    %v1175 = vld [vmem:[#allocation2 + $0x338] sm:$0xf]
    %v1176 = vld [vmem:[#allocation2 + $0x33c] sm:$0xf]
    %v1177 = vld [vmem:[#allocation2 + $0x340] sm:$0xf]
    %v1178 = vld [vmem:[#allocation2 + $0x344] sm:$0xf]
    %v1179 = vld [vmem:[#allocation2 + $0x348] sm:$0xf]
    %v1180 = vld [vmem:[#allocation2 + $0x34c] sm:$0xf]
    %v1181 = vld [vmem:[#allocation2 + $0x350] sm:$0xf]
    %v1182 = vld [vmem:[#allocation2 + $0x354] sm:$0xf]
    %v1183 = vld [vmem:[#allocation2 + $0x358] sm:$0xf]
    %v1184 = vld [vmem:[#allocation2 + $0x35c] sm:$0xf]
    %v1185 = vld [vmem:[#allocation2 + $0x360] sm:$0xf]
    %v1186 = vld [vmem:[#allocation2 + $0x364] sm:$0xf]
    %v1187 = vld [vmem:[#allocation2 + $0x368] sm:$0xf]
    %v1188 = vld [vmem:[#allocation2 + $0x36c] sm:$0xf]
    %v1189 = vld [vmem:[#allocation2 + $0x370] sm:$0xf]
    %v1190 = vld [vmem:[#allocation2 + $0x374] sm:$0xf]
    %v1191 = vld [vmem:[#allocation2 + $0x378] sm:$0xf]
    %v1192 = vld [vmem:[#allocation2 + $0x37c] sm:$0xf]
    %v1193 = vld [vmem:[#allocation2 + $0x380] sm:$0xf]
    %v1194 = vld [vmem:[#allocation2 + $0x384] sm:$0xf]
    %v1195 = vld [vmem:[#allocation2 + $0x388] sm:$0xf]
    %v1196 = vld [vmem:[#allocation2 + $0x38c] sm:$0xf]
    %v1197 = vld [vmem:[#allocation2 + $0x390] sm:$0xf]
    %v1198 = vld [vmem:[#allocation2 + $0x394] sm:$0xf]
    %v1199 = vld [vmem:[#allocation2 + $0x398] sm:$0xf]
    %v1200 = vld [vmem:[#allocation2 + $0x39c] sm:$0xf]
    %v1201 = vld [vmem:[#allocation2 + $0x3a0] sm:$0xf]
    %v1202 = vld [vmem:[#allocation2 + $0x3a4] sm:$0xf]
    %v1203 = vld [vmem:[#allocation2 + $0x3a8] sm:$0xf]
    %v1204 = vld [vmem:[#allocation2 + $0x3ac] sm:$0xf]
    %v1205 = vld [vmem:[#allocation2 + $0x3b0] sm:$0xf]
    %v1206 = vld [vmem:[#allocation2 + $0x3b4] sm:$0xf]
    %v1207 = vld [vmem:[#allocation2 + $0x3b8] sm:$0xf]
    %v1208 = vld [vmem:[#allocation2 + $0x3bc] sm:$0xf]
    %v1209 = vld [vmem:[#allocation2 + $0x3c0] sm:$0xf]
    %v1210 = vld [vmem:[#allocation2 + $0x3c4] sm:$0xf]
    %v1211 = vld [vmem:[#allocation2 + $0x3c8] sm:$0xf]
    %v1212 = vld [vmem:[#allocation2 + $0x3cc] sm:$0xf]
    %v1213 = vld [vmem:[#allocation2 + $0x3d0] sm:$0xf]
    %v1214 = vld [vmem:[#allocation2 + $0x3d4] sm:$0xf]
    %v1215 = vld [vmem:[#allocation2 + $0x3d8] sm:$0xf]
    %v1216 = vld [vmem:[#allocation2 + $0x3dc] sm:$0xf]
    %v1217 = vld [vmem:[#allocation2 + $0x3e0] sm:$0xf]
    %v1218 = vld [vmem:[#allocation2 + $0x3e4] sm:$0xf]
    %v1219 = vld [vmem:[#allocation2 + $0x3e8] sm:$0xf]
    %v1220 = vld [vmem:[#allocation2 + $0x3ec] sm:$0xf]
    %v1221 = vld [vmem:[#allocation2 + $0x3f0] sm:$0xf]
    %v1222 = vld [vmem:[#allocation2 + $0x3f4] sm:$0xf]
    %v1223 = vld [vmem:[#allocation2 + $0x3f8] sm:$0xf]
    %v1224 = vld [vmem:[#allocation2 + $0x3fc] sm:$0xf]
    %v1225 = vld [vmem:[#allocation2 + $0x400] sm:$0xf]
    %v1226 = vld [vmem:[#allocation2 + $0x404] sm:$0xf]
    %v1227 = vld [vmem:[#allocation2 + $0x408] sm:$0xf]
    %v1228 = vld [vmem:[#allocation2 + $0x40c] sm:$0xf]
    %v1229 = vld [vmem:[#allocation2 + $0x410] sm:$0xf]
    %v1230 = vld [vmem:[#allocation2 + $0x414] sm:$0xf]
    %v1231 = vld [vmem:[#allocation2 + $0x418] sm:$0xf]
    %v1232 = vld [vmem:[#allocation2 + $0x41c] sm:$0xf]
    %v1233 = vld [vmem:[#allocation2 + $0x420] sm:$0xf]
    %v1234 = vld [vmem:[#allocation2 + $0x424] sm:$0xf]
    %v1235 = vld [vmem:[#allocation2 + $0x428] sm:$0xf]
    %v1236 = vld [vmem:[#allocation2 + $0x42c] sm:$0xf]
    %v1237 = vld [vmem:[#allocation2 + $0x430] sm:$0xf]
    %v1238 = vld [vmem:[#allocation2 + $0x434] sm:$0xf]
    %v1239 = vld [vmem:[#allocation2 + $0x438] sm:$0xf]
    %v1240 = vld [vmem:[#allocation2 + $0x43c] sm:$0xf]
    %v1241 = vld [vmem:[#allocation2 + $0x440] sm:$0xf]
    %v1242 = vld [vmem:[#allocation2 + $0x444] sm:$0xf]
    %v1243 = vld [vmem:[#allocation2 + $0x448] sm:$0xf]
    %v1244 = vld [vmem:[#allocation2 + $0x44c] sm:$0xf]
    %v1245 = vld [vmem:[#allocation2 + $0x450] sm:$0xf]
    %v1246 = vld [vmem:[#allocation2 + $0x454] sm:$0xf]
    %v1247 = vld [vmem:[#allocation2 + $0x458] sm:$0xf]
    %v1248 = vld [vmem:[#allocation2 + $0x45c] sm:$0xf]
    %v1249 = vld [vmem:[#allocation2 + $0x460] sm:$0xf]
    %v1250 = vld [vmem:[#allocation2 + $0x464] sm:$0xf]
    %v1251 = vld [vmem:[#allocation2 + $0x468] sm:$0xf]
    %v1252 = vld [vmem:[#allocation2 + $0x46c] sm:$0xf]
    %v1253 = vld [vmem:[#allocation2 + $0x470] sm:$0xf]
    %v1254 = vld [vmem:[#allocation2 + $0x474] sm:$0xf]
    %v1255 = vld [vmem:[#allocation2 + $0x478] sm:$0xf]
    %v1256 = vld [vmem:[#allocation2 + $0x47c] sm:$0xf]
    %v1257 = vld [vmem:[#allocation2 + $0x480] sm:$0xf]
    %v1258 = vld [vmem:[#allocation2 + $0x484] sm:$0xf]
    %v1259 = vld [vmem:[#allocation2 + $0x488] sm:$0xf]
    %v1260 = vld [vmem:[#allocation2 + $0x48c] sm:$0xf]
    %v1261 = vld [vmem:[#allocation2 + $0x490] sm:$0xf]
    %v1262 = vld [vmem:[#allocation2 + $0x494] sm:$0xf]
    %v1263 = vld [vmem:[#allocation2 + $0x498] sm:$0xf]
    %v1264 = vld [vmem:[#allocation2 + $0x49c] sm:$0xf]
    %v1265 = vld [vmem:[#allocation2 + $0x4a0] sm:$0xf]
    %v1266 = vld [vmem:[#allocation2 + $0x4a4] sm:$0xf]
    %v1267 = vld [vmem:[#allocation2 + $0x4a8] sm:$0xf]
    %v1268 = vld [vmem:[#allocation2 + $0x4ac] sm:$0xf]
    %v1269 = vld [vmem:[#allocation2 + $0x4b0] sm:$0xf]
    %v1270 = vld [vmem:[#allocation2 + $0x4b4] sm:$0xf]
    %v1271 = vld [vmem:[#allocation2 + $0x4b8] sm:$0xf]
    %v1272 = vld [vmem:[#allocation2 + $0x4bc] sm:$0xf]
    %v1273 = vld [vmem:[#allocation2 + $0x4c0] sm:$0xf]
    %v1274 = vld [vmem:[#allocation2 + $0x4c4] sm:$0xf]
    %v1275 = vld [vmem:[#allocation2 + $0x4c8] sm:$0xf]
    %v1276 = vld [vmem:[#allocation2 + $0x4cc] sm:$0xf]
    %v1277 = vld [vmem:[#allocation2 + $0x4d0] sm:$0xf]
    %v1278 = vld [vmem:[#allocation2 + $0x4d4] sm:$0xf]
    %v1279 = vld [vmem:[#allocation2 + $0x4d8] sm:$0xf]
    %v1280 = vld [vmem:[#allocation2 + $0x4dc] sm:$0xf]
    %v1281 = vld [vmem:[#allocation2 + $0x4e0] sm:$0xf]
    %v1282 = vld [vmem:[#allocation2 + $0x4e4] sm:$0xf]
    %v1283 = vld [vmem:[#allocation2 + $0x4e8] sm:$0xf]
    %v1284 = vld [vmem:[#allocation2 + $0x4ec] sm:$0xf]
    %v1285 = vld [vmem:[#allocation2 + $0x4f0] sm:$0xf]
    %v1286 = vld [vmem:[#allocation2 + $0x4f4] sm:$0xf]
    %v1287 = vld [vmem:[#allocation2 + $0x4f8] sm:$0xf]
    %v1288 = vld [vmem:[#allocation2 + $0x4fc] sm:$0xf]
    %v1289 = vld [vmem:[#allocation2 + $0x500] sm:$0xf]
    %v1290 = vld [vmem:[#allocation2 + $0x504] sm:$0xf]
    %v1291 = vld [vmem:[#allocation2 + $0x508] sm:$0xf]
    %v1292 = vld [vmem:[#allocation2 + $0x50c] sm:$0xf]
    %v1293 = vld [vmem:[#allocation2 + $0x510] sm:$0xf]
    %v1294 = vld [vmem:[#allocation2 + $0x514] sm:$0xf]
    %v1295 = vld [vmem:[#allocation2 + $0x518] sm:$0xf]
    %v1296 = vld [vmem:[#allocation2 + $0x51c] sm:$0xf]
    %v1297 = vld [vmem:[#allocation2 + $0x520] sm:$0xf]
    %v1298 = vld [vmem:[#allocation2 + $0x524] sm:$0xf]
    %v1299 = vld [vmem:[#allocation2 + $0x528] sm:$0xf]
    %v1300 = vld [vmem:[#allocation2 + $0x52c] sm:$0xf]
    %v1301 = vld [vmem:[#allocation2 + $0x530] sm:$0xf]
    %v1302 = vld [vmem:[#allocation2 + $0x534] sm:$0xf]
    %v1303 = vld [vmem:[#allocation2 + $0x538] sm:$0xf]
    %v1304 = vld [vmem:[#allocation2 + $0x53c] sm:$0xf]
    %v1305 = vld [vmem:[#allocation2 + $0x540] sm:$0xf]
    %v1306 = vld [vmem:[#allocation2 + $0x544] sm:$0xf]
    %v1307 = vld [vmem:[#allocation2 + $0x548] sm:$0xf]
    %v1308 = vld [vmem:[#allocation2 + $0x54c] sm:$0xf]
    %v1309 = vld [vmem:[#allocation2 + $0x550] sm:$0xf]
    %v1310 = vld [vmem:[#allocation2 + $0x554] sm:$0xf]
    %v1311 = vld [vmem:[#allocation2 + $0x558] sm:$0xf]
    %v1312 = vld [vmem:[#allocation2 + $0x55c] sm:$0xf]
    %v1313 = vld [vmem:[#allocation2 + $0x560] sm:$0xf]
    %v1314 = vld [vmem:[#allocation2 + $0x564] sm:$0xf]
    %v1315 = vld [vmem:[#allocation2 + $0x568] sm:$0xf]
    %v1316 = vld [vmem:[#allocation2 + $0x56c] sm:$0xf]
    %v1317 = vld [vmem:[#allocation2 + $0x570] sm:$0xf]
    %v1318 = vld [vmem:[#allocation2 + $0x574] sm:$0xf]
    %v1319 = vld [vmem:[#allocation2 + $0x578] sm:$0xf]
    %v1320 = vld [vmem:[#allocation2 + $0x57c] sm:$0xf]
    %v1321 = vld [vmem:[#allocation2 + $0x580] sm:$0xf]
    %v1322 = vld [vmem:[#allocation2 + $0x584] sm:$0xf]
    %v1323 = vld [vmem:[#allocation2 + $0x588] sm:$0xf]
    %v1324 = vld [vmem:[#allocation2 + $0x58c] sm:$0xf]
    %v1325 = vld [vmem:[#allocation2 + $0x590] sm:$0xf]
    %v1326 = vld [vmem:[#allocation2 + $0x594] sm:$0xf]
    %v1327 = vld [vmem:[#allocation2 + $0x598] sm:$0xf]
    %v1328 = vld [vmem:[#allocation2 + $0x59c] sm:$0xf]
    %v1329 = vld [vmem:[#allocation2 + $0x5a0] sm:$0xf]
    %v1330 = vld [vmem:[#allocation2 + $0x5a4] sm:$0xf]
    %v1331 = vld [vmem:[#allocation2 + $0x5a8] sm:$0xf]
    %v1332 = vld [vmem:[#allocation2 + $0x5ac] sm:$0xf]
    %v1333 = vld [vmem:[#allocation2 + $0x5b0] sm:$0xf]
    %v1334 = vld [vmem:[#allocation2 + $0x5b4] sm:$0xf]
    %v1335 = vld [vmem:[#allocation2 + $0x5b8] sm:$0xf]
    %v1336 = vld [vmem:[#allocation2 + $0x5bc] sm:$0xf]
    %v1337 = vld [vmem:[#allocation2 + $0x5c0] sm:$0xf]
    %v1338 = vld [vmem:[#allocation2 + $0x5c4] sm:$0xf]
    %v1339 = vld [vmem:[#allocation2 + $0x5c8] sm:$0xf]
    %v1340 = vld [vmem:[#allocation2 + $0x5cc] sm:$0xf]
    %v1341 = vld [vmem:[#allocation2 + $0x5d0] sm:$0xf]
    %v1342 = vld [vmem:[#allocation2 + $0x5d4] sm:$0xf]
    %v1343 = vld [vmem:[#allocation2 + $0x5d8] sm:$0xf]
    %v1344 = vld [vmem:[#allocation2 + $0x5dc] sm:$0xf]
    %v1345 = vld [vmem:[#allocation2 + $0x5e0] sm:$0xf]
    %v1346 = vld [vmem:[#allocation2 + $0x5e4] sm:$0xf]
    %v1347 = vld [vmem:[#allocation2 + $0x5e8] sm:$0xf]
    %v1348 = vld [vmem:[#allocation2 + $0x5ec] sm:$0xf]
    %v1349 = vld [vmem:[#allocation2 + $0x5f0] sm:$0xf]
    %v1350 = vld [vmem:[#allocation2 + $0x5f4] sm:$0xf]
    %v1351 = vld [vmem:[#allocation2 + $0x5f8] sm:$0xf]
    %v1352 = vld [vmem:[#allocation2 + $0x5fc] sm:$0xf]
    %v1353 = vld [vmem:[#allocation2 + $0x600] sm:$0xf]
    %v1354 = vld [vmem:[#allocation2 + $0x604] sm:$0xf]
    %v1355 = vld [vmem:[#allocation2 + $0x608] sm:$0xf]
    %v1356 = vld [vmem:[#allocation2 + $0x60c] sm:$0xf]
    %v1357 = vld [vmem:[#allocation2 + $0x610] sm:$0xf]
    %v1358 = vld [vmem:[#allocation2 + $0x614] sm:$0xf]
    %v1359 = vld [vmem:[#allocation2 + $0x618] sm:$0xf]
    %v1360 = vld [vmem:[#allocation2 + $0x61c] sm:$0xf]
    %v1361 = vld [vmem:[#allocation2 + $0x620] sm:$0xf]
    %v1362 = vld [vmem:[#allocation2 + $0x624] sm:$0xf]
    %v1363 = vld [vmem:[#allocation2 + $0x628] sm:$0xf]
    %v1364 = vld [vmem:[#allocation2 + $0x62c] sm:$0xf]
    %v1365 = vld [vmem:[#allocation2 + $0x630] sm:$0xf]
    %v1366 = vld [vmem:[#allocation2 + $0x634] sm:$0xf]
    %v1367 = vld [vmem:[#allocation2 + $0x638] sm:$0xf]
    %v1368 = vld [vmem:[#allocation2 + $0x63c] sm:$0xf]
    %v1369 = vld [vmem:[#allocation2 + $0x640] sm:$0xf]
    %v1370 = vld [vmem:[#allocation2 + $0x644] sm:$0xf]
    %v1371 = vld [vmem:[#allocation2 + $0x648] sm:$0xf]
    %v1372 = vld [vmem:[#allocation2 + $0x64c] sm:$0xf]
    %v1373 = vld [vmem:[#allocation2 + $0x650] sm:$0xf]
    %v1374 = vld [vmem:[#allocation2 + $0x654] sm:$0xf]
    %v1375 = vld [vmem:[#allocation2 + $0x658] sm:$0xf]
    %v1376 = vld [vmem:[#allocation2 + $0x65c] sm:$0xf]
    %v1377 = vld [vmem:[#allocation2 + $0x660] sm:$0xf]
    %v1378 = vld [vmem:[#allocation2 + $0x664] sm:$0xf]
    %v1379 = vld [vmem:[#allocation2 + $0x668] sm:$0xf]
    %v1380 = vld [vmem:[#allocation2 + $0x66c] sm:$0xf]
    %v1381 = vld [vmem:[#allocation2 + $0x670] sm:$0xf]
    %v1382 = vld [vmem:[#allocation2 + $0x674] sm:$0xf]
    %v1383 = vld [vmem:[#allocation2 + $0x678] sm:$0xf]
    %v1384 = vld [vmem:[#allocation2 + $0x67c] sm:$0xf]
    %v1385 = vld [vmem:[%s4] sm:$0x1]
    %v1387 = vlaneseq
    %v1388 = vshrl.u32 %v1387, 7
    %v1389 = vsub.s32 0, %v1388
    %v1390 = vrot.slane %v1385, %v1389
    %v1808 = vunpack.c.l.b16 %v969
    %v1809 = vunpack.c.l.b16 %v970
    %v1810 = vunpack.c.l.b16 %v971
    %v1811 = vunpack.c.l.b16 %v972
    %v1812 = vunpack.c.l.b16 %v973
    %v1813 = vunpack.c.l.b16 %v974
    %v1814 = vunpack.c.l.b16 %v975
    %v1815 = vunpack.c.l.b16 %v976
    %v1816 = vunpack.c.l.b16 %v977
    %v1817 = vunpack.c.l.b16 %v978
    %v1818 = vunpack.c.l.b16 %v979
    %v1819 = vunpack.c.l.b16 %v980
    %v1820 = vunpack.c.l.b16 %v981
    %v1821 = vunpack.c.l.b16 %v982
    %v1822 = vunpack.c.l.b16 %v983
    %v1823 = vunpack.c.l.b16 %v984
    %v1824 = vunpack.c.l.b16 %v985
    %v1825 = vunpack.c.l.b16 %v986
    %v1826 = vunpack.c.l.b16 %v987
    %v1827 = vunpack.c.l.b16 %v988
    %v1828 = vunpack.c.l.b16 %v989
    %v1829 = vunpack.c.l.b16 %v990
    %v1830 = vunpack.c.l.b16 %v991
    %v1831 = vunpack.c.l.b16 %v992
    %v1832 = vunpack.c.l.b16 %v993
    %v1833 = vunpack.c.l.b16 %v994
    %v1834 = vunpack.c.l.b16 %v995
    %v1835 = vunpack.c.l.b16 %v996
    %v1836 = vunpack.c.l.b16 %v997
    %v1837 = vunpack.c.l.b16 %v998
    %v1838 = vunpack.c.l.b16 %v999
    %v1839 = vunpack.c.l.b16 %v1000
    %v1840 = vunpack.c.l.b16 %v1001
    %v1841 = vunpack.c.l.b16 %v1002
    %v1842 = vunpack.c.l.b16 %v1003
    %v1843 = vunpack.c.l.b16 %v1004
    %v1844 = vunpack.c.l.b16 %v1005
    %v1845 = vunpack.c.l.b16 %v1006
    %v1846 = vunpack.c.l.b16 %v1007
    %v1847 = vunpack.c.l.b16 %v1008
    %v1848 = vunpack.c.l.b16 %v1009
    %v1849 = vunpack.c.l.b16 %v1010
    %v1850 = vunpack.c.l.b16 %v1011
    %v1851 = vunpack.c.l.b16 %v1012
    %v1852 = vunpack.c.l.b16 %v1013
    %v1853 = vunpack.c.l.b16 %v1014
    %v1854 = vunpack.c.l.b16 %v1015
    %v1855 = vunpack.c.l.b16 %v1016
    %v1856 = vunpack.c.l.b16 %v1017
    %v1857 = vunpack.c.l.b16 %v1018
    %v1858 = vunpack.c.l.b16 %v1019
    %v1859 = vunpack.c.l.b16 %v1020
    %v1860 = vunpack.c.l.b16 %v1021
    %v1861 = vunpack.c.l.b16 %v1022
    %v1862 = vunpack.c.l.b16 %v1023
    %v1863 = vunpack.c.l.b16 %v1024
    %v1864 = vunpack.c.l.b16 %v1025
    %v1865 = vunpack.c.l.b16 %v1026
    %v1866 = vunpack.c.l.b16 %v1027
    %v1867 = vunpack.c.l.b16 %v1028
    %v1868 = vunpack.c.l.b16 %v1029
    %v1869 = vunpack.c.l.b16 %v1030
    %v1870 = vunpack.c.l.b16 %v1031
    %v1871 = vunpack.c.l.b16 %v1032
    %v1872 = vunpack.c.l.b16 %v1033
    %v1873 = vunpack.c.l.b16 %v1034
    %v1874 = vunpack.c.l.b16 %v1035
    %v1875 = vunpack.c.l.b16 %v1036
    %v1876 = vunpack.c.l.b16 %v1037
    %v1877 = vunpack.c.l.b16 %v1038
    %v1878 = vunpack.c.l.b16 %v1039
    %v1879 = vunpack.c.l.b16 %v1040
    %v1880 = vunpack.c.l.b16 %v1041
    %v1881 = vunpack.c.l.b16 %v1042
    %v1882 = vunpack.c.l.b16 %v1043
    %v1883 = vunpack.c.l.b16 %v1044
    %v1884 = vunpack.c.l.b16 %v1045
    %v1885 = vunpack.c.l.b16 %v1046
    %v1886 = vunpack.c.l.b16 %v1047
    %v1887 = vunpack.c.l.b16 %v1048
    %v1888 = vunpack.c.l.b16 %v1049
    %v1889 = vunpack.c.l.b16 %v1050
    %v1890 = vunpack.c.l.b16 %v1051
    %v1891 = vunpack.c.l.b16 %v1052
    %v1892 = vunpack.c.l.b16 %v1053
    %v1893 = vunpack.c.l.b16 %v1054
    %v1894 = vunpack.c.l.b16 %v1055
    %v1895 = vunpack.c.l.b16 %v1056
    %v1896 = vunpack.c.l.b16 %v1057
    %v1897 = vunpack.c.l.b16 %v1058
    %v1898 = vunpack.c.l.b16 %v1059
    %v1899 = vunpack.c.l.b16 %v1060
    %v1900 = vunpack.c.l.b16 %v1061
    %v1901 = vunpack.c.l.b16 %v1062
    %v1902 = vunpack.c.l.b16 %v1063
    %v1903 = vunpack.c.l.b16 %v1064
    %v1904 = vunpack.c.l.b16 %v1065
    %v1905 = vunpack.c.l.b16 %v1066
    %v1906 = vunpack.c.l.b16 %v1067
    %v1907 = vunpack.c.l.b16 %v1068
    %v1908 = vunpack.c.l.b16 %v1069
    %v1909 = vunpack.c.l.b16 %v1070
    %v1910 = vunpack.c.l.b16 %v1071
    %v1911 = vunpack.c.l.b16 %v1072
    %v1912 = vunpack.c.l.b16 %v1073
    %v1913 = vunpack.c.l.b16 %v1074
    %v1914 = vunpack.c.l.b16 %v1075
    %v1915 = vunpack.c.l.b16 %v1076
    %v1916 = vunpack.c.l.b16 %v1077
    %v1917 = vunpack.c.l.b16 %v1078
    %v1918 = vunpack.c.l.b16 %v1079
    %v1919 = vunpack.c.l.b16 %v1080
    %v1920 = vunpack.c.l.b16 %v1081
    %v1921 = vunpack.c.l.b16 %v1082
    %v1922 = vunpack.c.l.b16 %v1083
    %v1923 = vunpack.c.l.b16 %v1084
    %v1924 = vunpack.c.l.b16 %v1085
    %v1925 = vunpack.c.l.b16 %v1086
    %v1926 = vunpack.c.l.b16 %v1087
    %v1927 = vunpack.c.l.b16 %v1088
    %v1928 = vunpack.c.l.b16 %v1089
    %v1929 = vunpack.c.l.b16 %v1090
    %v1930 = vunpack.c.l.b16 %v1091
    %v1931 = vunpack.c.l.b16 %v1092
    %v1932 = vunpack.c.l.b16 %v1093
    %v1933 = vunpack.c.l.b16 %v1094
    %v1934 = vunpack.c.l.b16 %v1095
    %v1935 = vunpack.c.l.b16 %v1096
    %v1936 = vunpack.c.l.b16 %v1097
    %v1937 = vunpack.c.l.b16 %v1098
    %v1938 = vunpack.c.l.b16 %v1099
    %v1939 = vunpack.c.l.b16 %v1100
    %v1940 = vunpack.c.l.b16 %v1101
    %v1941 = vunpack.c.l.b16 %v1102
    %v1942 = vunpack.c.l.b16 %v1103
    %v1943 = vunpack.c.l.b16 %v1104
    %v1944 = vunpack.c.l.b16 %v1105
    %v1945 = vunpack.c.l.b16 %v1106
    %v1946 = vunpack.c.l.b16 %v1107
    %v1947 = vunpack.c.l.b16 %v1108
    %v1948 = vunpack.c.l.b16 %v1109
    %v1949 = vunpack.c.l.b16 %v1110
    %v1950 = vunpack.c.l.b16 %v1111
    %v1951 = vunpack.c.l.b16 %v1112
    %v1952 = vunpack.c.l.b16 %v1113
    %v1953 = vunpack.c.l.b16 %v1114
    %v1954 = vunpack.c.l.b16 %v1115
    %v1955 = vunpack.c.l.b16 %v1116
    %v1956 = vunpack.c.l.b16 %v1117
    %v1957 = vunpack.c.l.b16 %v1118
    %v1958 = vunpack.c.l.b16 %v1119
    %v1959 = vunpack.c.l.b16 %v1120
    %v1960 = vunpack.c.l.b16 %v1121
    %v1961 = vunpack.c.l.b16 %v1122
    %v1962 = vunpack.c.l.b16 %v1123
    %v1963 = vunpack.c.l.b16 %v1124
    %v1964 = vunpack.c.l.b16 %v1125
    %v1965 = vunpack.c.l.b16 %v1126
    %v1966 = vunpack.c.l.b16 %v1127
    %v1967 = vunpack.c.l.b16 %v1128
    %v1968 = vunpack.c.l.b16 %v1129
    %v1969 = vunpack.c.l.b16 %v1130
    %v1970 = vunpack.c.l.b16 %v1131
    %v1971 = vunpack.c.l.b16 %v1132
    %v1972 = vunpack.c.l.b16 %v1133
    %v1973 = vunpack.c.l.b16 %v1134
    %v1974 = vunpack.c.l.b16 %v1135
    %v1975 = vunpack.c.l.b16 %v1136
    %v1976 = vunpack.c.l.b16 %v1137
    %v1977 = vunpack.c.l.b16 %v1138
    %v1978 = vunpack.c.l.b16 %v1139
    %v1979 = vunpack.c.l.b16 %v1140
    %v1980 = vunpack.c.l.b16 %v1141
    %v1981 = vunpack.c.l.b16 %v1142
    %v1982 = vunpack.c.l.b16 %v1143
    %v1983 = vunpack.c.l.b16 %v1144
    %v1984 = vunpack.c.l.b16 %v1145
    %v1985 = vunpack.c.l.b16 %v1146
    %v1986 = vunpack.c.l.b16 %v1147
    %v1987 = vunpack.c.l.b16 %v1148
    %v1988 = vunpack.c.l.b16 %v1149
    %v1989 = vunpack.c.l.b16 %v1150
    %v1990 = vunpack.c.l.b16 %v1151
    %v1991 = vunpack.c.l.b16 %v1152
    %v1992 = vunpack.c.l.b16 %v1153
    %v1993 = vunpack.c.l.b16 %v1154
    %v1994 = vunpack.c.l.b16 %v1155
    %v1995 = vunpack.c.l.b16 %v1156
    %v1996 = vunpack.c.l.b16 %v1157
    %v1997 = vunpack.c.l.b16 %v1158
    %v1998 = vunpack.c.l.b16 %v1159
    %v1999 = vunpack.c.l.b16 %v1160
    %v2000 = vunpack.c.l.b16 %v1161
    %v2001 = vunpack.c.l.b16 %v1162
    %v2002 = vunpack.c.l.b16 %v1163
    %v2003 = vunpack.c.l.b16 %v1164
    %v2004 = vunpack.c.l.b16 %v1165
    %v2005 = vunpack.c.l.b16 %v1166
    %v2006 = vunpack.c.l.b16 %v1167
    %v2007 = vunpack.c.l.b16 %v1168
    %v2008 = vunpack.c.l.b16 %v1169
    %v2009 = vunpack.c.l.b16 %v1170
    %v2010 = vunpack.c.l.b16 %v1171
    %v2011 = vunpack.c.l.b16 %v1172
    %v2012 = vunpack.c.l.b16 %v1173
    %v2013 = vunpack.c.l.b16 %v1174
    %v2014 = vunpack.c.l.b16 %v1175
    %v2015 = vunpack.c.l.b16 %v1176
    %v2016 = vunpack.c.l.b16 %v1177
    %v2017 = vunpack.c.l.b16 %v1178
    %v2018 = vunpack.c.l.b16 %v1179
    %v2019 = vunpack.c.l.b16 %v1180
    %v2020 = vunpack.c.l.b16 %v1181
    %v2021 = vunpack.c.l.b16 %v1182
    %v2022 = vunpack.c.l.b16 %v1183
    %v2023 = vunpack.c.l.b16 %v1184
    %v2024 = vunpack.c.l.b16 %v1185
    %v2025 = vunpack.c.l.b16 %v1186
    %v2026 = vunpack.c.l.b16 %v1187
    %v2027 = vunpack.c.l.b16 %v1188
    %v2028 = vunpack.c.l.b16 %v1189
    %v2029 = vunpack.c.l.b16 %v1190
    %v2030 = vunpack.c.l.b16 %v1191
    %v2031 = vunpack.c.l.b16 %v1192
    %v2032 = vunpack.c.l.b16 %v1193
    %v2033 = vunpack.c.l.b16 %v1194
    %v2034 = vunpack.c.l.b16 %v1195
    %v2035 = vunpack.c.l.b16 %v1196
    %v2036 = vunpack.c.l.b16 %v1197
    %v2037 = vunpack.c.l.b16 %v1198
    %v2038 = vunpack.c.l.b16 %v1199
    %v2039 = vunpack.c.l.b16 %v1200
    %v2040 = vunpack.c.l.b16 %v1201
    %v2041 = vunpack.c.l.b16 %v1202
    %v2042 = vunpack.c.l.b16 %v1203
    %v2043 = vunpack.c.l.b16 %v1204
    %v2044 = vunpack.c.l.b16 %v1205
    %v2045 = vunpack.c.l.b16 %v1206
    %v2046 = vunpack.c.l.b16 %v1207
    %v2047 = vunpack.c.l.b16 %v1208
    %v2048 = vunpack.c.l.b16 %v1209
    %v2049 = vunpack.c.l.b16 %v1210
    %v2050 = vunpack.c.l.b16 %v1211
    %v2051 = vunpack.c.l.b16 %v1212
    %v2052 = vunpack.c.l.b16 %v1213
    %v2053 = vunpack.c.l.b16 %v1214
    %v2054 = vunpack.c.l.b16 %v1215
    %v2055 = vunpack.c.l.b16 %v1216
    %v2056 = vunpack.c.l.b16 %v1217
    %v2057 = vunpack.c.l.b16 %v1218
    %v2058 = vunpack.c.l.b16 %v1219
    %v2059 = vunpack.c.l.b16 %v1220
    %v2060 = vunpack.c.l.b16 %v1221
    %v2061 = vunpack.c.l.b16 %v1222
    %v2062 = vunpack.c.l.b16 %v1223
    %v2063 = vunpack.c.l.b16 %v1224
    %v2064 = vunpack.c.l.b16 %v1225
    %v2065 = vunpack.c.l.b16 %v1226
    %v2066 = vunpack.c.l.b16 %v1227
    %v2067 = vunpack.c.l.b16 %v1228
    %v2068 = vunpack.c.l.b16 %v1229
    %v2069 = vunpack.c.l.b16 %v1230
    %v2070 = vunpack.c.l.b16 %v1231
    %v2071 = vunpack.c.l.b16 %v1232
    %v2072 = vunpack.c.l.b16 %v1233
    %v2073 = vunpack.c.l.b16 %v1234
    %v2074 = vunpack.c.l.b16 %v1235
    %v2075 = vunpack.c.l.b16 %v1236
    %v2076 = vunpack.c.l.b16 %v1237
    %v2077 = vunpack.c.l.b16 %v1238
    %v2078 = vunpack.c.l.b16 %v1239
    %v2079 = vunpack.c.l.b16 %v1240
    %v2080 = vunpack.c.l.b16 %v1241
    %v2081 = vunpack.c.l.b16 %v1242
    %v2082 = vunpack.c.l.b16 %v1243
    %v2083 = vunpack.c.l.b16 %v1244
    %v2084 = vunpack.c.l.b16 %v1245
    %v2085 = vunpack.c.l.b16 %v1246
    %v2086 = vunpack.c.l.b16 %v1247
    %v2087 = vunpack.c.l.b16 %v1248
    %v2088 = vunpack.c.l.b16 %v1249
    %v2089 = vunpack.c.l.b16 %v1250
    %v2090 = vunpack.c.l.b16 %v1251
    %v2091 = vunpack.c.l.b16 %v1252
    %v2092 = vunpack.c.l.b16 %v1253
    %v2093 = vunpack.c.l.b16 %v1254
    %v2094 = vunpack.c.l.b16 %v1255
    %v2095 = vunpack.c.l.b16 %v1256
    %v2096 = vunpack.c.l.b16 %v1257
    %v2097 = vunpack.c.l.b16 %v1258
    %v2098 = vunpack.c.l.b16 %v1259
    %v2099 = vunpack.c.l.b16 %v1260
    %v2100 = vunpack.c.l.b16 %v1261
    %v2101 = vunpack.c.l.b16 %v1262
    %v2102 = vunpack.c.l.b16 %v1263
    %v2103 = vunpack.c.l.b16 %v1264
    %v2104 = vunpack.c.l.b16 %v1265
    %v2105 = vunpack.c.l.b16 %v1266
    %v2106 = vunpack.c.l.b16 %v1267
    %v2107 = vunpack.c.l.b16 %v1268
    %v2108 = vunpack.c.l.b16 %v1269
    %v2109 = vunpack.c.l.b16 %v1270
    %v2110 = vunpack.c.l.b16 %v1271
    %v2111 = vunpack.c.l.b16 %v1272
    %v2112 = vunpack.c.l.b16 %v1273
    %v2113 = vunpack.c.l.b16 %v1274
    %v2114 = vunpack.c.l.b16 %v1275
    %v2115 = vunpack.c.l.b16 %v1276
    %v2116 = vunpack.c.l.b16 %v1277
    %v2117 = vunpack.c.l.b16 %v1278
    %v2118 = vunpack.c.l.b16 %v1279
    %v2119 = vunpack.c.l.b16 %v1280
    %v2120 = vunpack.c.l.b16 %v1281
    %v2121 = vunpack.c.l.b16 %v1282
    %v2122 = vunpack.c.l.b16 %v1283
    %v2123 = vunpack.c.l.b16 %v1284
    %v2124 = vunpack.c.l.b16 %v1285
    %v2125 = vunpack.c.l.b16 %v1286
    %v2126 = vunpack.c.l.b16 %v1287
    %v2127 = vunpack.c.l.b16 %v1288
    %v2128 = vunpack.c.l.b16 %v1289
    %v2129 = vunpack.c.l.b16 %v1290
    %v2130 = vunpack.c.l.b16 %v1291
    %v2131 = vunpack.c.l.b16 %v1292
    %v2132 = vunpack.c.l.b16 %v1293
    %v2133 = vunpack.c.l.b16 %v1294
    %v2134 = vunpack.c.l.b16 %v1295
    %v2135 = vunpack.c.l.b16 %v1296
    %v2136 = vunpack.c.l.b16 %v1297
    %v2137 = vunpack.c.l.b16 %v1298
    %v2138 = vunpack.c.l.b16 %v1299
    %v2139 = vunpack.c.l.b16 %v1300
    %v2140 = vunpack.c.l.b16 %v1301
    %v2141 = vunpack.c.l.b16 %v1302
    %v2142 = vunpack.c.l.b16 %v1303
    %v2143 = vunpack.c.l.b16 %v1304
    %v2144 = vunpack.c.l.b16 %v1305
    %v2145 = vunpack.c.l.b16 %v1306
    %v2146 = vunpack.c.l.b16 %v1307
    %v2147 = vunpack.c.l.b16 %v1308
    %v2148 = vunpack.c.l.b16 %v1309
    %v2149 = vunpack.c.l.b16 %v1310
    %v2150 = vunpack.c.l.b16 %v1311
    %v2151 = vunpack.c.l.b16 %v1312
    %v2152 = vunpack.c.l.b16 %v1313
    %v2153 = vunpack.c.l.b16 %v1314
    %v2154 = vunpack.c.l.b16 %v1315
    %v2155 = vunpack.c.l.b16 %v1316
    %v2156 = vunpack.c.l.b16 %v1317
    %v2157 = vunpack.c.l.b16 %v1318
    %v2158 = vunpack.c.l.b16 %v1319
    %v2159 = vunpack.c.l.b16 %v1320
    %v2160 = vunpack.c.l.b16 %v1321
    %v2161 = vunpack.c.l.b16 %v1322
    %v2162 = vunpack.c.l.b16 %v1323
    %v2163 = vunpack.c.l.b16 %v1324
    %v2164 = vunpack.c.l.b16 %v1325
    %v2165 = vunpack.c.l.b16 %v1326
    %v2166 = vunpack.c.l.b16 %v1327
    %v2167 = vunpack.c.l.b16 %v1328
    %v2168 = vunpack.c.l.b16 %v1329
    %v2169 = vunpack.c.l.b16 %v1330
    %v2170 = vunpack.c.l.b16 %v1331
    %v2171 = vunpack.c.l.b16 %v1332
    %v2172 = vunpack.c.l.b16 %v1333
    %v2173 = vunpack.c.l.b16 %v1334
    %v2174 = vunpack.c.l.b16 %v1335
    %v2175 = vunpack.c.l.b16 %v1336
    %v2176 = vunpack.c.l.b16 %v1337
    %v2177 = vunpack.c.l.b16 %v1338
    %v2178 = vunpack.c.l.b16 %v1339
    %v2179 = vunpack.c.l.b16 %v1340
    %v2180 = vunpack.c.l.b16 %v1341
    %v2181 = vunpack.c.l.b16 %v1342
    %v2182 = vunpack.c.l.b16 %v1343
    %v2183 = vunpack.c.l.b16 %v1344
    %v2184 = vunpack.c.l.b16 %v1345
    %v2185 = vunpack.c.l.b16 %v1346
    %v2186 = vunpack.c.l.b16 %v1347
    %v2187 = vunpack.c.l.b16 %v1348
    %v2188 = vunpack.c.l.b16 %v1349
    %v2189 = vunpack.c.l.b16 %v1350
    %v2190 = vunpack.c.l.b16 %v1351
    %v2191 = vunpack.c.l.b16 %v1352
    %v2192 = vunpack.c.l.b16 %v1353
    %v2193 = vunpack.c.l.b16 %v1354
    %v2194 = vunpack.c.l.b16 %v1355
    %v2195 = vunpack.c.l.b16 %v1356
    %v2196 = vunpack.c.l.b16 %v1357
    %v2197 = vunpack.c.l.b16 %v1358
    %v2198 = vunpack.c.l.b16 %v1359
    %v2199 = vunpack.c.l.b16 %v1360
    %v2200 = vunpack.c.l.b16 %v1361
    %v2201 = vunpack.c.l.b16 %v1362
    %v2202 = vunpack.c.l.b16 %v1363
    %v2203 = vunpack.c.l.b16 %v1364
    %v2204 = vunpack.c.l.b16 %v1365
    %v2205 = vunpack.c.l.b16 %v1366
    %v2206 = vunpack.c.l.b16 %v1367
    %v2207 = vunpack.c.l.b16 %v1368
    %v2208 = vunpack.c.l.b16 %v1369
    %v2209 = vunpack.c.l.b16 %v1370
    %v2210 = vunpack.c.l.b16 %v1371
    %v2211 = vunpack.c.l.b16 %v1372
    %v2212 = vunpack.c.l.b16 %v1373
    %v2213 = vunpack.c.l.b16 %v1374
    %v2214 = vunpack.c.l.b16 %v1375
    %v2215 = vunpack.c.l.b16 %v1376
    %v2216 = vunpack.c.l.b16 %v1377
    %v2217 = vunpack.c.l.b16 %v1378
    %v2218 = vunpack.c.l.b16 %v1379
    %v2219 = vunpack.c.l.b16 %v1380
    %v2220 = vunpack.c.l.b16 %v1381
    %v2221 = vunpack.c.l.b16 %v1382
    %v2222 = vunpack.c.l.b16 %v1383
    %v2223 = vunpack.c.l.b16 %v1384
    %v2224 = vpack.c.b16 %v1809, %v1808
    %v2225 = vpack.c.b16 %v1811, %v1810
    %v2226 = vpack.c.b16 %v1813, %v1812
    %v2227 = vpack.c.b16 %v1815, %v1814
    %v2228 = vpack.c.b16 %v1817, %v1816
    %v2229 = vpack.c.b16 %v1819, %v1818
    %v2230 = vpack.c.b16 %v1821, %v1820
    %v2231 = vpack.c.b16 %v1823, %v1822
    %v2232 = vpack.c.b16 %v1825, %v1824
    %v2233 = vpack.c.b16 %v1827, %v1826
    %v2234 = vpack.c.b16 %v1829, %v1828
    %v2235 = vpack.c.b16 %v1831, %v1830
    %v2236 = vpack.c.b16 %v1833, %v1832
    %v2237 = vpack.c.b16 %v1835, %v1834
    %v2238 = vpack.c.b16 %v1837, %v1836
    %v2239 = vpack.c.b16 %v1839, %v1838
    %v2240 = vpack.c.b16 %v1841, %v1840
    %v2241 = vpack.c.b16 %v1843, %v1842
    %v2242 = vpack.c.b16 %v1845, %v1844
    %v2243 = vpack.c.b16 %v1847, %v1846
    %v2244 = vpack.c.b16 %v1849, %v1848
    %v2245 = vpack.c.b16 %v1851, %v1850
    %v2246 = vpack.c.b16 %v1853, %v1852
    %v2247 = vpack.c.b16 %v1855, %v1854
    %v2248 = vpack.c.b16 %v1857, %v1856
    %v2249 = vpack.c.b16 %v1859, %v1858
    %v2250 = vpack.c.b16 %v1861, %v1860
    %v2251 = vpack.c.b16 %v1863, %v1862
    %v2252 = vpack.c.b16 %v1865, %v1864
    %v2253 = vpack.c.b16 %v1867, %v1866
    %v2254 = vpack.c.b16 %v1869, %v1868
    %v2255 = vpack.c.b16 %v1871, %v1870
    %v2256 = vpack.c.b16 %v1873, %v1872
    %v2257 = vpack.c.b16 %v1875, %v1874
    %v2258 = vpack.c.b16 %v1877, %v1876
    %v2259 = vpack.c.b16 %v1879, %v1878
    %v2260 = vpack.c.b16 %v1881, %v1880
    %v2261 = vpack.c.b16 %v1883, %v1882
    %v2262 = vpack.c.b16 %v1885, %v1884
    %v2263 = vpack.c.b16 %v1887, %v1886
    %v2264 = vpack.c.b16 %v1889, %v1888
    %v2265 = vpack.c.b16 %v1891, %v1890
    %v2266 = vpack.c.b16 %v1893, %v1892
    %v2267 = vpack.c.b16 %v1895, %v1894
    %v2268 = vpack.c.b16 %v1897, %v1896
    %v2269 = vpack.c.b16 %v1899, %v1898
    %v2270 = vpack.c.b16 %v1901, %v1900
    %v2271 = vpack.c.b16 %v1903, %v1902
    %v2272 = vpack.c.b16 %v1905, %v1904
    %v2273 = vpack.c.b16 %v1907, %v1906
    %v2274 = vpack.c.b16 %v1909, %v1908
    %v2275 = vpack.c.b16 %v1911, %v1910
    %v2276 = vpack.c.b16 %v1913, %v1912
    %v2277 = vpack.c.b16 %v1915, %v1914
    %v2278 = vpack.c.b16 %v1917, %v1916
    %v2279 = vpack.c.b16 %v1919, %v1918
    %v2280 = vpack.c.b16 %v1921, %v1920
    %v2281 = vpack.c.b16 %v1923, %v1922
    %v2282 = vpack.c.b16 %v1925, %v1924
    %v2283 = vpack.c.b16 %v1927, %v1926
    %v2284 = vpack.c.b16 %v1929, %v1928
    %v2285 = vpack.c.b16 %v1931, %v1930
    %v2286 = vpack.c.b16 %v1933, %v1932
    %v2287 = vpack.c.b16 %v1935, %v1934
    %v2288 = vpack.c.b16 %v1937, %v1936
    %v2289 = vpack.c.b16 %v1939, %v1938
    %v2290 = vpack.c.b16 %v1941, %v1940
    %v2291 = vpack.c.b16 %v1943, %v1942
    %v2292 = vpack.c.b16 %v1945, %v1944
    %v2293 = vpack.c.b16 %v1947, %v1946
    %v2294 = vpack.c.b16 %v1949, %v1948
    %v2295 = vpack.c.b16 %v1951, %v1950
    %v2296 = vpack.c.b16 %v1953, %v1952
    %v2297 = vpack.c.b16 %v1955, %v1954
    %v2298 = vpack.c.b16 %v1957, %v1956
    %v2299 = vpack.c.b16 %v1959, %v1958
    %v2300 = vpack.c.b16 %v1961, %v1960
    %v2301 = vpack.c.b16 %v1963, %v1962
    %v2302 = vpack.c.b16 %v1965, %v1964
    %v2303 = vpack.c.b16 %v1967, %v1966
    %v2304 = vpack.c.b16 %v1969, %v1968
    %v2305 = vpack.c.b16 %v1971, %v1970
    %v2306 = vpack.c.b16 %v1973, %v1972
    %v2307 = vpack.c.b16 %v1975, %v1974
    %v2308 = vpack.c.b16 %v1977, %v1976
    %v2309 = vpack.c.b16 %v1979, %v1978
    %v2310 = vpack.c.b16 %v1981, %v1980
    %v2311 = vpack.c.b16 %v1983, %v1982
    %v2312 = vpack.c.b16 %v1985, %v1984
    %v2313 = vpack.c.b16 %v1987, %v1986
    %v2314 = vpack.c.b16 %v1989, %v1988
    %v2315 = vpack.c.b16 %v1991, %v1990
    %v2316 = vpack.c.b16 %v1993, %v1992
    %v2317 = vpack.c.b16 %v1995, %v1994
    %v2318 = vpack.c.b16 %v1997, %v1996
    %v2319 = vpack.c.b16 %v1999, %v1998
    %v2320 = vpack.c.b16 %v2001, %v2000
    %v2321 = vpack.c.b16 %v2003, %v2002
    %v2322 = vpack.c.b16 %v2005, %v2004
    %v2323 = vpack.c.b16 %v2007, %v2006
    %v2324 = vpack.c.b16 %v2009, %v2008
    %v2325 = vpack.c.b16 %v2011, %v2010
    %v2326 = vpack.c.b16 %v2013, %v2012
    %v2327 = vpack.c.b16 %v2015, %v2014
    %v2328 = vpack.c.b16 %v2017, %v2016
    %v2329 = vpack.c.b16 %v2019, %v2018
    %v2330 = vpack.c.b16 %v2021, %v2020
    %v2331 = vpack.c.b16 %v2023, %v2022
    %v2332 = vpack.c.b16 %v2025, %v2024
    %v2333 = vpack.c.b16 %v2027, %v2026
    %v2334 = vpack.c.b16 %v2029, %v2028
    %v2335 = vpack.c.b16 %v2031, %v2030
    %v2336 = vpack.c.b16 %v2033, %v2032
    %v2337 = vpack.c.b16 %v2035, %v2034
    %v2338 = vpack.c.b16 %v2037, %v2036
    %v2339 = vpack.c.b16 %v2039, %v2038
    %v2340 = vpack.c.b16 %v2041, %v2040
    %v2341 = vpack.c.b16 %v2043, %v2042
    %v2342 = vpack.c.b16 %v2045, %v2044
    %v2343 = vpack.c.b16 %v2047, %v2046
    %v2344 = vpack.c.b16 %v2049, %v2048
    %v2345 = vpack.c.b16 %v2051, %v2050
    %v2346 = vpack.c.b16 %v2053, %v2052
    %v2347 = vpack.c.b16 %v2055, %v2054
    %v2348 = vpack.c.b16 %v2057, %v2056
    %v2349 = vpack.c.b16 %v2059, %v2058
    %v2350 = vpack.c.b16 %v2061, %v2060
    %v2351 = vpack.c.b16 %v2063, %v2062
    %v2352 = vpack.c.b16 %v2065, %v2064
    %v2353 = vpack.c.b16 %v2067, %v2066
    %v2354 = vpack.c.b16 %v2069, %v2068
    %v2355 = vpack.c.b16 %v2071, %v2070
    %v2356 = vpack.c.b16 %v2073, %v2072
    %v2357 = vpack.c.b16 %v2075, %v2074
    %v2358 = vpack.c.b16 %v2077, %v2076
    %v2359 = vpack.c.b16 %v2079, %v2078
    %v2360 = vpack.c.b16 %v2081, %v2080
    %v2361 = vpack.c.b16 %v2083, %v2082
    %v2362 = vpack.c.b16 %v2085, %v2084
    %v2363 = vpack.c.b16 %v2087, %v2086
    %v2364 = vpack.c.b16 %v2089, %v2088
    %v2365 = vpack.c.b16 %v2091, %v2090
    %v2366 = vpack.c.b16 %v2093, %v2092
    %v2367 = vpack.c.b16 %v2095, %v2094
    %v2368 = vpack.c.b16 %v2097, %v2096
    %v2369 = vpack.c.b16 %v2099, %v2098
    %v2370 = vpack.c.b16 %v2101, %v2100
    %v2371 = vpack.c.b16 %v2103, %v2102
    %v2372 = vpack.c.b16 %v2105, %v2104
    %v2373 = vpack.c.b16 %v2107, %v2106
    %v2374 = vpack.c.b16 %v2109, %v2108
    %v2375 = vpack.c.b16 %v2111, %v2110
    %v2376 = vpack.c.b16 %v2113, %v2112
    %v2377 = vpack.c.b16 %v2115, %v2114
    %v2378 = vpack.c.b16 %v2117, %v2116
    %v2379 = vpack.c.b16 %v2119, %v2118
    %v2380 = vpack.c.b16 %v2121, %v2120
    %v2381 = vpack.c.b16 %v2123, %v2122
    %v2382 = vpack.c.b16 %v2125, %v2124
    %v2383 = vpack.c.b16 %v2127, %v2126
    %v2384 = vpack.c.b16 %v2129, %v2128
    %v2385 = vpack.c.b16 %v2131, %v2130
    %v2386 = vpack.c.b16 %v2133, %v2132
    %v2387 = vpack.c.b16 %v2135, %v2134
    %v2388 = vpack.c.b16 %v2137, %v2136
    %v2389 = vpack.c.b16 %v2139, %v2138
    %v2390 = vpack.c.b16 %v2141, %v2140
    %v2391 = vpack.c.b16 %v2143, %v2142
    %v2392 = vpack.c.b16 %v2145, %v2144
    %v2393 = vpack.c.b16 %v2147, %v2146
    %v2394 = vpack.c.b16 %v2149, %v2148
    %v2395 = vpack.c.b16 %v2151, %v2150
    %v2396 = vpack.c.b16 %v2153, %v2152
    %v2397 = vpack.c.b16 %v2155, %v2154
    %v2398 = vpack.c.b16 %v2157, %v2156
    %v2399 = vpack.c.b16 %v2159, %v2158
    %v2400 = vpack.c.b16 %v2161, %v2160
    %v2401 = vpack.c.b16 %v2163, %v2162
    %v2402 = vpack.c.b16 %v2165, %v2164
    %v2403 = vpack.c.b16 %v2167, %v2166
    %v2404 = vpack.c.b16 %v2169, %v2168
    %v2405 = vpack.c.b16 %v2171, %v2170
    %v2406 = vpack.c.b16 %v2173, %v2172
    %v2407 = vpack.c.b16 %v2175, %v2174
    %v2408 = vpack.c.b16 %v2177, %v2176
    %v2409 = vpack.c.b16 %v2179, %v2178
    %v2410 = vpack.c.b16 %v2181, %v2180
    %v2411 = vpack.c.b16 %v2183, %v2182
    %v2412 = vpack.c.b16 %v2185, %v2184
    %v2413 = vpack.c.b16 %v2187, %v2186
    %v2414 = vpack.c.b16 %v2189, %v2188
    %v2415 = vpack.c.b16 %v2191, %v2190
    %v2416 = vpack.c.b16 %v2193, %v2192
    %v2417 = vpack.c.b16 %v2195, %v2194
    %v2418 = vpack.c.b16 %v2197, %v2196
    %v2419 = vpack.c.b16 %v2199, %v2198
    %v2420 = vpack.c.b16 %v2201, %v2200
    %v2421 = vpack.c.b16 %v2203, %v2202
    %v2422 = vpack.c.b16 %v2205, %v2204
    %v2423 = vpack.c.b16 %v2207, %v2206
    %v2424 = vpack.c.b16 %v2209, %v2208
    %v2425 = vpack.c.b16 %v2211, %v2210
    %v2426 = vpack.c.b16 %v2213, %v2212
    %v2427 = vpack.c.b16 %v2215, %v2214
    %v2428 = vpack.c.b16 %v2217, %v2216
    %v2429 = vpack.c.b16 %v2219, %v2218
    %v2430 = vpack.c.b16 %v2221, %v2220
    %v2431 = vpack.c.b16 %v2223, %v2222
    %2640 = vmatprep.subr.bf16.mxu0 0
    %2641 = vmatpush1.bf16.msra.mxu0 %v2224
    %2642 = vmatprep.subr.bf16.mxu0 0
    %2643 = vmatpush1.bf16.msra.mxu0 %v2225
    %2644 = vmatprep.subr.bf16.mxu0 0
    %2645 = vmatpush1.bf16.msra.mxu0 %v2226
    %2646 = vmatprep.subr.bf16.mxu0 0
    %2647 = vmatpush1.bf16.msra.mxu0 %v2227
    %2648 = vmatprep.subr.bf16.mxu0 0
    %2649 = vmatpush1.bf16.msra.mxu0 %v2228
    %2650 = vmatprep.subr.bf16.mxu0 0
    %2651 = vmatpush1.bf16.msra.mxu0 %v2229
    %2652 = vmatprep.subr.bf16.mxu0 0
    %2653 = vmatpush1.bf16.msra.mxu0 %v2230
    %2654 = vmatprep.subr.bf16.mxu0 0
    %2655 = vmatpush1.bf16.msra.mxu0 %v2231
    %2656 = vmatprep.subr.bf16.mxu0 0
    %2657 = vmatpush1.bf16.msra.mxu0 %v2232
    %2658 = vmatprep.subr.bf16.mxu0 0
    %2659 = vmatpush1.bf16.msra.mxu0 %v2233
    %2660 = vmatprep.subr.bf16.mxu0 0
    %2661 = vmatpush1.bf16.msra.mxu0 %v2234
    %2662 = vmatprep.subr.bf16.mxu0 0
    %2663 = vmatpush1.bf16.msra.mxu0 %v2235
    %2664 = vmatprep.subr.bf16.mxu0 0
    %2665 = vmatpush1.bf16.msra.mxu0 %v2236
    %2666 = vmatprep.subr.bf16.mxu0 0
    %2667 = vmatpush1.bf16.msra.mxu0 %v2237
    %2668 = vmatprep.subr.bf16.mxu0 0
    %2669 = vmatpush1.bf16.msra.mxu0 %v2238
    %2670 = vmatprep.subr.bf16.mxu0 0
    %2671 = vmatpush1.bf16.msra.mxu0 %v2239
    %2672 = vmatprep.mubr.bf16.mxu0 %v944
    %2673 = vmatmul.mubr.bf16.gmra.mrb[0].mxu0 %v943
    %v2674 = vpop.f32.mrb[0].mxu0
    %v2675 = vadd.f32 %v1390, %v2674
    %v2676 = vpop.f32.mrb[0].mxu0
    %v2677 = vpop.f32.mrb[0].mxu0
    %v2678 = vpop.f32.mrb[0].mxu0
    %2679 = vdwg.mxu0
    %2680 = vmatprep.subr.bf16.mxu0 0
    %2681 = vmatpush1.bf16.msra.mxu0 %v2240
    %2682 = vmatprep.subr.bf16.mxu0 0
    %2683 = vmatpush1.bf16.msra.mxu0 %v2241
    %2684 = vmatprep.subr.bf16.mxu0 0
    %2685 = vmatpush1.bf16.msra.mxu0 %v2242
    %2686 = vmatprep.subr.bf16.mxu0 0
    %2687 = vmatpush1.bf16.msra.mxu0 %v2243
    %2688 = vmatprep.subr.bf16.mxu0 0
    %2689 = vmatpush1.bf16.msra.mxu0 %v2244
    %2690 = vmatprep.subr.bf16.mxu0 0
    %2691 = vmatpush1.bf16.msra.mxu0 %v2245
    %2692 = vmatprep.subr.bf16.mxu0 0
    %2693 = vmatpush1.bf16.msra.mxu0 %v2246
    %2694 = vmatprep.subr.bf16.mxu0 0
    %2695 = vmatpush1.bf16.msra.mxu0 %v2247
    %2696 = vmatprep.subr.bf16.mxu0 0
    %2697 = vmatpush1.bf16.msra.mxu0 %v2248
    %2698 = vmatprep.subr.bf16.mxu0 0
    %2699 = vmatpush1.bf16.msra.mxu0 %v2249
    %2700 = vmatprep.subr.bf16.mxu0 0
    %2701 = vmatpush1.bf16.msra.mxu0 %v2250
    %2702 = vmatprep.subr.bf16.mxu0 0
    %2703 = vmatpush1.bf16.msra.mxu0 %v2251
    %2704 = vmatprep.subr.bf16.mxu0 0
    %2705 = vmatpush1.bf16.msra.mxu0 %v2252
    %2706 = vmatprep.subr.bf16.mxu0 0
    %2707 = vmatpush1.bf16.msra.mxu0 %v2253
    %2708 = vmatprep.subr.bf16.mxu0 0
    %2709 = vmatpush1.bf16.msra.mxu0 %v2254
    %2710 = vmatprep.subr.bf16.mxu0 0
    %2711 = vmatpush1.bf16.msra.mxu0 %v2255
    %2712 = vmatprep.mubr.bf16.mxu0 %v946
    %2713 = vmatmul.mubr.bf16.gmra.mrb[0].mxu0 %v945
    %v2714 = vpop.f32.mrb[0].mxu0
    %v2715 = vadd.f32 %v2675, %v2714
    %v2716 = vpop.f32.mrb[0].mxu0
    %v2717 = vpop.f32.mrb[0].mxu0
    %v2718 = vpop.f32.mrb[0].mxu0
    %2719 = vdwg.mxu0
    %2720 = vmatprep.subr.bf16.mxu0 0
    %2721 = vmatpush1.bf16.msra.mxu0 %v2256
    %2722 = vmatprep.subr.bf16.mxu0 0
    %2723 = vmatpush1.bf16.msra.mxu0 %v2257
    %2724 = vmatprep.subr.bf16.mxu0 0
    %2725 = vmatpush1.bf16.msra.mxu0 %v2258
    %2726 = vmatprep.subr.bf16.mxu0 0
    %2727 = vmatpush1.bf16.msra.mxu0 %v2259
    %2728 = vmatprep.subr.bf16.mxu0 0
    %2729 = vmatpush1.bf16.msra.mxu0 %v2260
    %2730 = vmatprep.subr.bf16.mxu0 0
    %2731 = vmatpush1.bf16.msra.mxu0 %v2261
    %2732 = vmatprep.subr.bf16.mxu0 0
    %2733 = vmatpush1.bf16.msra.mxu0 %v2262
    %2734 = vmatprep.subr.bf16.mxu0 0
    %2735 = vmatpush1.bf16.msra.mxu0 %v2263
    %2736 = vmatprep.subr.bf16.mxu0 0
    %2737 = vmatpush1.bf16.msra.mxu0 %v2264
    %2738 = vmatprep.subr.bf16.mxu0 0
    %2739 = vmatpush1.bf16.msra.mxu0 %v2265
    %2740 = vmatprep.subr.bf16.mxu0 0
    %2741 = vmatpush1.bf16.msra.mxu0 %v2266
    %2742 = vmatprep.subr.bf16.mxu0 0
    %2743 = vmatpush1.bf16.msra.mxu0 %v2267
    %2744 = vmatprep.subr.bf16.mxu0 0
    %2745 = vmatpush1.bf16.msra.mxu0 %v2268
    %2746 = vmatprep.subr.bf16.mxu0 0
    %2747 = vmatpush1.bf16.msra.mxu0 %v2269
    %2748 = vmatprep.subr.bf16.mxu0 0
    %2749 = vmatpush1.bf16.msra.mxu0 %v2270
    %2750 = vmatprep.subr.bf16.mxu0 0
    %2751 = vmatpush1.bf16.msra.mxu0 %v2271
    %2752 = vmatprep.mubr.bf16.mxu0 %v948
    %2753 = vmatmul.mubr.bf16.gmra.mrb[0].mxu0 %v947
    %v2754 = vpop.f32.mrb[0].mxu0
    %v2755 = vadd.f32 %v2715, %v2754
    %v2756 = vpop.f32.mrb[0].mxu0
    %v2757 = vpop.f32.mrb[0].mxu0
    %v2758 = vpop.f32.mrb[0].mxu0
    %2759 = vdwg.mxu0
    %2760 = vmatprep.subr.bf16.mxu0 0
    %2761 = vmatpush1.bf16.msra.mxu0 %v2272
    %2762 = vmatprep.subr.bf16.mxu0 0
    %2763 = vmatpush1.bf16.msra.mxu0 %v2273
    %2764 = vmatprep.subr.bf16.mxu0 0
    %2765 = vmatpush1.bf16.msra.mxu0 %v2274
    %2766 = vmatprep.subr.bf16.mxu0 0
    %2767 = vmatpush1.bf16.msra.mxu0 %v2275
    %2768 = vmatprep.subr.bf16.mxu0 0
    %2769 = vmatpush1.bf16.msra.mxu0 %v2276
    %2770 = vmatprep.subr.bf16.mxu0 0
    %2771 = vmatpush1.bf16.msra.mxu0 %v2277
    %2772 = vmatprep.subr.bf16.mxu0 0
    %2773 = vmatpush1.bf16.msra.mxu0 %v2278
    %2774 = vmatprep.subr.bf16.mxu0 0
    %2775 = vmatpush1.bf16.msra.mxu0 %v2279
    %2776 = vmatprep.subr.bf16.mxu0 0
    %2777 = vmatpush1.bf16.msra.mxu0 %v2280
    %2778 = vmatprep.subr.bf16.mxu0 0
    %2779 = vmatpush1.bf16.msra.mxu0 %v2281
    %2780 = vmatprep.subr.bf16.mxu0 0
    %2781 = vmatpush1.bf16.msra.mxu0 %v2282
    %2782 = vmatprep.subr.bf16.mxu0 0
    %2783 = vmatpush1.bf16.msra.mxu0 %v2283
    %2784 = vmatprep.subr.bf16.mxu0 0
    %2785 = vmatpush1.bf16.msra.mxu0 %v2284
    %2786 = vmatprep.subr.bf16.mxu0 0
    %2787 = vmatpush1.bf16.msra.mxu0 %v2285
    %2788 = vmatprep.subr.bf16.mxu0 0
    %2789 = vmatpush1.bf16.msra.mxu0 %v2286
    %2790 = vmatprep.subr.bf16.mxu0 0
    %2791 = vmatpush1.bf16.msra.mxu0 %v2287
    %2792 = vmatprep.mubr.bf16.mxu0 %v950
    %2793 = vmatmul.mubr.bf16.gmra.mrb[0].mxu0 %v949
    %v2794 = vpop.f32.mrb[0].mxu0
    %v2795 = vadd.f32 %v2755, %v2794
    %v2796 = vpop.f32.mrb[0].mxu0
    %v2797 = vpop.f32.mrb[0].mxu0
    %v2798 = vpop.f32.mrb[0].mxu0
    %2799 = vdwg.mxu0
    %2800 = vmatprep.subr.bf16.mxu0 0
    %2801 = vmatpush1.bf16.msra.mxu0 %v2288
    %2802 = vmatprep.subr.bf16.mxu0 0
    %2803 = vmatpush1.bf16.msra.mxu0 %v2289
    %2804 = vmatprep.subr.bf16.mxu0 0
    %2805 = vmatpush1.bf16.msra.mxu0 %v2290
    %2806 = vmatprep.subr.bf16.mxu0 0
    %2807 = vmatpush1.bf16.msra.mxu0 %v2291
    %2808 = vmatprep.subr.bf16.mxu0 0
    %2809 = vmatpush1.bf16.msra.mxu0 %v2292
    %2810 = vmatprep.subr.bf16.mxu0 0
    %2811 = vmatpush1.bf16.msra.mxu0 %v2293
    %2812 = vmatprep.subr.bf16.mxu0 0
    %2813 = vmatpush1.bf16.msra.mxu0 %v2294
    %2814 = vmatprep.subr.bf16.mxu0 0
    %2815 = vmatpush1.bf16.msra.mxu0 %v2295
    %2816 = vmatprep.subr.bf16.mxu0 0
    %2817 = vmatpush1.bf16.msra.mxu0 %v2296
    %2818 = vmatprep.subr.bf16.mxu0 0
    %2819 = vmatpush1.bf16.msra.mxu0 %v2297
    %2820 = vmatprep.subr.bf16.mxu0 0
    %2821 = vmatpush1.bf16.msra.mxu0 %v2298
    %2822 = vmatprep.subr.bf16.mxu0 0
    %2823 = vmatpush1.bf16.msra.mxu0 %v2299
    %2824 = vmatprep.subr.bf16.mxu0 0
    %2825 = vmatpush1.bf16.msra.mxu0 %v2300
    %2826 = vmatprep.subr.bf16.mxu0 0
    %2827 = vmatpush1.bf16.msra.mxu0 %v2301
    %2828 = vmatprep.subr.bf16.mxu0 0
    %2829 = vmatpush1.bf16.msra.mxu0 %v2302
    %2830 = vmatprep.subr.bf16.mxu0 0
    %2831 = vmatpush1.bf16.msra.mxu0 %v2303
    %2832 = vmatprep.mubr.bf16.mxu0 %v952
    %2833 = vmatmul.mubr.bf16.gmra.mrb[0].mxu0 %v951
    %v2834 = vpop.f32.mrb[0].mxu0
    %v2835 = vadd.f32 %v2795, %v2834
    %v2836 = vpop.f32.mrb[0].mxu0
    %v2837 = vpop.f32.mrb[0].mxu0
    %v2838 = vpop.f32.mrb[0].mxu0
    %2839 = vdwg.mxu0
    %2840 = vmatprep.subr.bf16.mxu0 0
    %2841 = vmatpush1.bf16.msra.mxu0 %v2304
    %2842 = vmatprep.subr.bf16.mxu0 0
    %2843 = vmatpush1.bf16.msra.mxu0 %v2305
    %2844 = vmatprep.subr.bf16.mxu0 0
    %2845 = vmatpush1.bf16.msra.mxu0 %v2306
    %2846 = vmatprep.subr.bf16.mxu0 0
    %2847 = vmatpush1.bf16.msra.mxu0 %v2307
    %2848 = vmatprep.subr.bf16.mxu0 0
    %2849 = vmatpush1.bf16.msra.mxu0 %v2308
    %2850 = vmatprep.subr.bf16.mxu0 0
    %2851 = vmatpush1.bf16.msra.mxu0 %v2309
    %2852 = vmatprep.subr.bf16.mxu0 0
    %2853 = vmatpush1.bf16.msra.mxu0 %v2310
    %2854 = vmatprep.subr.bf16.mxu0 0
    %2855 = vmatpush1.bf16.msra.mxu0 %v2311
    %2856 = vmatprep.subr.bf16.mxu0 0
    %2857 = vmatpush1.bf16.msra.mxu0 %v2312
    %2858 = vmatprep.subr.bf16.mxu0 0
    %2859 = vmatpush1.bf16.msra.mxu0 %v2313
    %2860 = vmatprep.subr.bf16.mxu0 0
    %2861 = vmatpush1.bf16.msra.mxu0 %v2314
    %2862 = vmatprep.subr.bf16.mxu0 0
    %2863 = vmatpush1.bf16.msra.mxu0 %v2315
    %2864 = vmatprep.subr.bf16.mxu0 0
    %2865 = vmatpush1.bf16.msra.mxu0 %v2316
    %2866 = vmatprep.subr.bf16.mxu0 0
    %2867 = vmatpush1.bf16.msra.mxu0 %v2317
    %2868 = vmatprep.subr.bf16.mxu0 0
    %2869 = vmatpush1.bf16.msra.mxu0 %v2318
    %2870 = vmatprep.subr.bf16.mxu0 0
    %2871 = vmatpush1.bf16.msra.mxu0 %v2319
    %2872 = vmatprep.mubr.bf16.mxu0 %v954
    %2873 = vmatmul.mubr.bf16.gmra.mrb[0].mxu0 %v953
    %v2874 = vpop.f32.mrb[0].mxu0
    %v2875 = vadd.f32 %v2835, %v2874
    %v2876 = vpop.f32.mrb[0].mxu0
    %v2877 = vpop.f32.mrb[0].mxu0
    %v2878 = vpop.f32.mrb[0].mxu0
    %2879 = vdwg.mxu0
    %2880 = vmatprep.subr.bf16.mxu0 0
    %2881 = vmatpush1.bf16.msra.mxu0 %v2320
    %2882 = vmatprep.subr.bf16.mxu0 0
    %2883 = vmatpush1.bf16.msra.mxu0 %v2321
    %2884 = vmatprep.subr.bf16.mxu0 0
    %2885 = vmatpush1.bf16.msra.mxu0 %v2322
    %2886 = vmatprep.subr.bf16.mxu0 0
    %2887 = vmatpush1.bf16.msra.mxu0 %v2323
    %2888 = vmatprep.subr.bf16.mxu0 0
    %2889 = vmatpush1.bf16.msra.mxu0 %v2324
    %2890 = vmatprep.subr.bf16.mxu0 0
    %2891 = vmatpush1.bf16.msra.mxu0 %v2325
    %2892 = vmatprep.subr.bf16.mxu0 0
    %2893 = vmatpush1.bf16.msra.mxu0 %v2326
    %2894 = vmatprep.subr.bf16.mxu0 0
    %2895 = vmatpush1.bf16.msra.mxu0 %v2327
    %2896 = vmatprep.subr.bf16.mxu0 0
    %2897 = vmatpush1.bf16.msra.mxu0 %v2328
    %2898 = vmatprep.subr.bf16.mxu0 0
    %2899 = vmatpush1.bf16.msra.mxu0 %v2329
    %2900 = vmatprep.subr.bf16.mxu0 0
    %2901 = vmatpush1.bf16.msra.mxu0 %v2330
    %2902 = vmatprep.subr.bf16.mxu0 0
    %2903 = vmatpush1.bf16.msra.mxu0 %v2331
    %2904 = vmatprep.subr.bf16.mxu0 0
    %2905 = vmatpush1.bf16.msra.mxu0 %v2332
    %2906 = vmatprep.subr.bf16.mxu0 0
    %2907 = vmatpush1.bf16.msra.mxu0 %v2333
    %2908 = vmatprep.subr.bf16.mxu0 0
    %2909 = vmatpush1.bf16.msra.mxu0 %v2334
    %2910 = vmatprep.subr.bf16.mxu0 0
    %2911 = vmatpush1.bf16.msra.mxu0 %v2335
    %2912 = vmatprep.mubr.bf16.mxu0 %v956
    %2913 = vmatmul.mubr.bf16.gmra.mrb[0].mxu0 %v955
    %v2914 = vpop.f32.mrb[0].mxu0
    %v2915 = vadd.f32 %v2875, %v2914
    %v2916 = vpop.f32.mrb[0].mxu0
    %v2917 = vpop.f32.mrb[0].mxu0
    %v2918 = vpop.f32.mrb[0].mxu0
    %2919 = vdwg.mxu0
    %2920 = vmatprep.subr.bf16.mxu0 0
    %2921 = vmatpush1.bf16.msra.mxu0 %v2336
    %2922 = vmatprep.subr.bf16.mxu0 0
    %2923 = vmatpush1.bf16.msra.mxu0 %v2337
    %2924 = vmatprep.subr.bf16.mxu0 0
    %2925 = vmatpush1.bf16.msra.mxu0 %v2338
    %2926 = vmatprep.subr.bf16.mxu0 0
    %2927 = vmatpush1.bf16.msra.mxu0 %v2339
    %2928 = vmatprep.subr.bf16.mxu0 0
    %2929 = vmatpush1.bf16.msra.mxu0 %v2340
    %2930 = vmatprep.subr.bf16.mxu0 0
    %2931 = vmatpush1.bf16.msra.mxu0 %v2341
    %2932 = vmatprep.subr.bf16.mxu0 0
    %2933 = vmatpush1.bf16.msra.mxu0 %v2342
    %2934 = vmatprep.subr.bf16.mxu0 0
    %2935 = vmatpush1.bf16.msra.mxu0 %v2343
    %2936 = vmatprep.subr.bf16.mxu0 0
    %2937 = vmatpush1.bf16.msra.mxu0 %v2344
    %2938 = vmatprep.subr.bf16.mxu0 0
    %2939 = vmatpush1.bf16.msra.mxu0 %v2345
    %2940 = vmatprep.subr.bf16.mxu0 0
    %2941 = vmatpush1.bf16.msra.mxu0 %v2346
    %2942 = vmatprep.subr.bf16.mxu0 0
    %2943 = vmatpush1.bf16.msra.mxu0 %v2347
    %2944 = vmatprep.subr.bf16.mxu0 0
    %2945 = vmatpush1.bf16.msra.mxu0 %v2348
    %2946 = vmatprep.subr.bf16.mxu0 0
    %2947 = vmatpush1.bf16.msra.mxu0 %v2349
    %2948 = vmatprep.subr.bf16.mxu0 0
    %2949 = vmatpush1.bf16.msra.mxu0 %v2350
    %2950 = vmatprep.subr.bf16.mxu0 0
    %2951 = vmatpush1.bf16.msra.mxu0 %v2351
    %2952 = vmatprep.mubr.bf16.mxu0 %v958
    %2953 = vmatmul.mubr.bf16.gmra.mrb[0].mxu0 %v957
    %v2954 = vpop.f32.mrb[0].mxu0
    %v2955 = vadd.f32 %v2915, %v2954
    %v2956 = vpop.f32.mrb[0].mxu0
    %v2957 = vpop.f32.mrb[0].mxu0
    %v2958 = vpop.f32.mrb[0].mxu0
    %2959 = vdwg.mxu0
    %2960 = vmatprep.subr.bf16.mxu0 0
    %2961 = vmatpush1.bf16.msra.mxu0 %v2352
    %2962 = vmatprep.subr.bf16.mxu0 0
    %2963 = vmatpush1.bf16.msra.mxu0 %v2353
    %2964 = vmatprep.subr.bf16.mxu0 0
    %2965 = vmatpush1.bf16.msra.mxu0 %v2354
    %2966 = vmatprep.subr.bf16.mxu0 0
    %2967 = vmatpush1.bf16.msra.mxu0 %v2355
    %2968 = vmatprep.subr.bf16.mxu0 0
    %2969 = vmatpush1.bf16.msra.mxu0 %v2356
    %2970 = vmatprep.subr.bf16.mxu0 0
    %2971 = vmatpush1.bf16.msra.mxu0 %v2357
    %2972 = vmatprep.subr.bf16.mxu0 0
    %2973 = vmatpush1.bf16.msra.mxu0 %v2358
    %2974 = vmatprep.subr.bf16.mxu0 0
    %2975 = vmatpush1.bf16.msra.mxu0 %v2359
    %2976 = vmatprep.subr.bf16.mxu0 0
    %2977 = vmatpush1.bf16.msra.mxu0 %v2360
    %2978 = vmatprep.subr.bf16.mxu0 0
    %2979 = vmatpush1.bf16.msra.mxu0 %v2361
    %2980 = vmatprep.subr.bf16.mxu0 0
    %2981 = vmatpush1.bf16.msra.mxu0 %v2362
    %2982 = vmatprep.subr.bf16.mxu0 0
    %2983 = vmatpush1.bf16.msra.mxu0 %v2363
    %2984 = vmatprep.subr.bf16.mxu0 0
    %2985 = vmatpush1.bf16.msra.mxu0 %v2364
    %2986 = vmatprep.subr.bf16.mxu0 0
    %2987 = vmatpush1.bf16.msra.mxu0 %v2365
    %2988 = vmatprep.subr.bf16.mxu0 0
    %2989 = vmatpush1.bf16.msra.mxu0 %v2366
    %2990 = vmatprep.subr.bf16.mxu0 0
    %2991 = vmatpush1.bf16.msra.mxu0 %v2367
    %2992 = vmatprep.mubr.bf16.mxu0 %v960
    %2993 = vmatmul.mubr.bf16.gmra.mrb[0].mxu0 %v959
    %v2994 = vpop.f32.mrb[0].mxu0
    %v2995 = vadd.f32 %v2955, %v2994
    %v2996 = vpop.f32.mrb[0].mxu0
    %v2997 = vpop.f32.mrb[0].mxu0
    %v2998 = vpop.f32.mrb[0].mxu0
    %2999 = vdwg.mxu0
    %3000 = vmatprep.subr.bf16.mxu0 0
    %3001 = vmatpush1.bf16.msra.mxu0 %v2368
    %3002 = vmatprep.subr.bf16.mxu0 0
    %3003 = vmatpush1.bf16.msra.mxu0 %v2369
    %3004 = vmatprep.subr.bf16.mxu0 0
    %3005 = vmatpush1.bf16.msra.mxu0 %v2370
    %3006 = vmatprep.subr.bf16.mxu0 0
    %3007 = vmatpush1.bf16.msra.mxu0 %v2371
    %3008 = vmatprep.subr.bf16.mxu0 0
    %3009 = vmatpush1.bf16.msra.mxu0 %v2372
    %3010 = vmatprep.subr.bf16.mxu0 0
    %3011 = vmatpush1.bf16.msra.mxu0 %v2373
    %3012 = vmatprep.subr.bf16.mxu0 0
    %3013 = vmatpush1.bf16.msra.mxu0 %v2374
    %3014 = vmatprep.subr.bf16.mxu0 0
    %3015 = vmatpush1.bf16.msra.mxu0 %v2375
    %3016 = vmatprep.subr.bf16.mxu0 0
    %3017 = vmatpush1.bf16.msra.mxu0 %v2376
    %3018 = vmatprep.subr.bf16.mxu0 0
    %3019 = vmatpush1.bf16.msra.mxu0 %v2377
    %3020 = vmatprep.subr.bf16.mxu0 0
    %3021 = vmatpush1.bf16.msra.mxu0 %v2378
    %3022 = vmatprep.subr.bf16.mxu0 0
    %3023 = vmatpush1.bf16.msra.mxu0 %v2379
    %3024 = vmatprep.subr.bf16.mxu0 0
    %3025 = vmatpush1.bf16.msra.mxu0 %v2380
    %3026 = vmatprep.subr.bf16.mxu0 0
    %3027 = vmatpush1.bf16.msra.mxu0 %v2381
    %3028 = vmatprep.subr.bf16.mxu0 0
    %3029 = vmatpush1.bf16.msra.mxu0 %v2382
    %3030 = vmatprep.subr.bf16.mxu0 0
    %3031 = vmatpush1.bf16.msra.mxu0 %v2383
    %3032 = vmatprep.mubr.bf16.mxu0 %v962
    %3033 = vmatmul.mubr.bf16.gmra.mrb[0].mxu0 %v961
    %v3034 = vpop.f32.mrb[0].mxu0
    %v3035 = vadd.f32 %v2995, %v3034
    %v3036 = vpop.f32.mrb[0].mxu0
    %v3037 = vpop.f32.mrb[0].mxu0
    %v3038 = vpop.f32.mrb[0].mxu0
    %3039 = vdwg.mxu0
    %3040 = vmatprep.subr.bf16.mxu0 0
    %3041 = vmatpush1.bf16.msra.mxu0 %v2384
    %3042 = vmatprep.subr.bf16.mxu0 0
    %3043 = vmatpush1.bf16.msra.mxu0 %v2385
    %3044 = vmatprep.subr.bf16.mxu0 0
    %3045 = vmatpush1.bf16.msra.mxu0 %v2386
    %3046 = vmatprep.subr.bf16.mxu0 0
    %3047 = vmatpush1.bf16.msra.mxu0 %v2387
    %3048 = vmatprep.subr.bf16.mxu0 0
    %3049 = vmatpush1.bf16.msra.mxu0 %v2388
    %3050 = vmatprep.subr.bf16.mxu0 0
    %3051 = vmatpush1.bf16.msra.mxu0 %v2389
    %3052 = vmatprep.subr.bf16.mxu0 0
    %3053 = vmatpush1.bf16.msra.mxu0 %v2390
    %3054 = vmatprep.subr.bf16.mxu0 0
    %3055 = vmatpush1.bf16.msra.mxu0 %v2391
    %3056 = vmatprep.subr.bf16.mxu0 0
    %3057 = vmatpush1.bf16.msra.mxu0 %v2392
    %3058 = vmatprep.subr.bf16.mxu0 0
    %3059 = vmatpush1.bf16.msra.mxu0 %v2393
    %3060 = vmatprep.subr.bf16.mxu0 0
    %3061 = vmatpush1.bf16.msra.mxu0 %v2394
    %3062 = vmatprep.subr.bf16.mxu0 0
    %3063 = vmatpush1.bf16.msra.mxu0 %v2395
    %3064 = vmatprep.subr.bf16.mxu0 0
    %3065 = vmatpush1.bf16.msra.mxu0 %v2396
    %3066 = vmatprep.subr.bf16.mxu0 0
    %3067 = vmatpush1.bf16.msra.mxu0 %v2397
    %3068 = vmatprep.subr.bf16.mxu0 0
    %3069 = vmatpush1.bf16.msra.mxu0 %v2398
    %3070 = vmatprep.subr.bf16.mxu0 0
    %3071 = vmatpush1.bf16.msra.mxu0 %v2399
    %3072 = vmatprep.mubr.bf16.mxu0 %v964
    %3073 = vmatmul.mubr.bf16.gmra.mrb[0].mxu0 %v963
    %v3074 = vpop.f32.mrb[0].mxu0
    %v3075 = vadd.f32 %v3035, %v3074
    %v3076 = vpop.f32.mrb[0].mxu0
    %v3077 = vpop.f32.mrb[0].mxu0
    %v3078 = vpop.f32.mrb[0].mxu0
    %3079 = vdwg.mxu0
    %3080 = vmatprep.subr.bf16.mxu0 0
    %3081 = vmatpush1.bf16.msra.mxu0 %v2400
    %3082 = vmatprep.subr.bf16.mxu0 0
    %3083 = vmatpush1.bf16.msra.mxu0 %v2401
    %3084 = vmatprep.subr.bf16.mxu0 0
    %3085 = vmatpush1.bf16.msra.mxu0 %v2402
    %3086 = vmatprep.subr.bf16.mxu0 0
    %3087 = vmatpush1.bf16.msra.mxu0 %v2403
    %3088 = vmatprep.subr.bf16.mxu0 0
    %3089 = vmatpush1.bf16.msra.mxu0 %v2404
    %3090 = vmatprep.subr.bf16.mxu0 0
    %3091 = vmatpush1.bf16.msra.mxu0 %v2405
    %3092 = vmatprep.subr.bf16.mxu0 0
    %3093 = vmatpush1.bf16.msra.mxu0 %v2406
    %3094 = vmatprep.subr.bf16.mxu0 0
    %3095 = vmatpush1.bf16.msra.mxu0 %v2407
    %3096 = vmatprep.subr.bf16.mxu0 0
    %3097 = vmatpush1.bf16.msra.mxu0 %v2408
    %3098 = vmatprep.subr.bf16.mxu0 0
    %3099 = vmatpush1.bf16.msra.mxu0 %v2409
    %3100 = vmatprep.subr.bf16.mxu0 0
    %3101 = vmatpush1.bf16.msra.mxu0 %v2410
    %3102 = vmatprep.subr.bf16.mxu0 0
    %3103 = vmatpush1.bf16.msra.mxu0 %v2411
    %3104 = vmatprep.subr.bf16.mxu0 0
    %3105 = vmatpush1.bf16.msra.mxu0 %v2412
    %3106 = vmatprep.subr.bf16.mxu0 0
    %3107 = vmatpush1.bf16.msra.mxu0 %v2413
    %3108 = vmatprep.subr.bf16.mxu0 0
    %3109 = vmatpush1.bf16.msra.mxu0 %v2414
    %3110 = vmatprep.subr.bf16.mxu0 0
    %3111 = vmatpush1.bf16.msra.mxu0 %v2415
    %3112 = vmatprep.mubr.bf16.mxu0 %v966
    %3113 = vmatmul.mubr.bf16.gmra.mrb[0].mxu0 %v965
    %v3114 = vpop.f32.mrb[0].mxu0
    %v3115 = vadd.f32 %v3075, %v3114
    %v3116 = vpop.f32.mrb[0].mxu0
    %v3117 = vpop.f32.mrb[0].mxu0
    %v3118 = vpop.f32.mrb[0].mxu0
    %3119 = vdwg.mxu0
    %3120 = vmatprep.subr.bf16.mxu0 0
    %3121 = vmatpush1.bf16.msra.mxu0 %v2416
    %3122 = vmatprep.subr.bf16.mxu0 0
    %3123 = vmatpush1.bf16.msra.mxu0 %v2417
    %3124 = vmatprep.subr.bf16.mxu0 0
    %3125 = vmatpush1.bf16.msra.mxu0 %v2418
    %3126 = vmatprep.subr.bf16.mxu0 0
    %3127 = vmatpush1.bf16.msra.mxu0 %v2419
    %3128 = vmatprep.subr.bf16.mxu0 0
    %3129 = vmatpush1.bf16.msra.mxu0 %v2420
    %3130 = vmatprep.subr.bf16.mxu0 0
    %3131 = vmatpush1.bf16.msra.mxu0 %v2421
    %3132 = vmatprep.subr.bf16.mxu0 0
    %3133 = vmatpush1.bf16.msra.mxu0 %v2422
    %3134 = vmatprep.subr.bf16.mxu0 0
    %3135 = vmatpush1.bf16.msra.mxu0 %v2423
    %3136 = vmatprep.subr.bf16.mxu0 0
    %3137 = vmatpush1.bf16.msra.mxu0 %v2424
    %3138 = vmatprep.subr.bf16.mxu0 0
    %3139 = vmatpush1.bf16.msra.mxu0 %v2425
    %3140 = vmatprep.subr.bf16.mxu0 0
    %3141 = vmatpush1.bf16.msra.mxu0 %v2426
    %3142 = vmatprep.subr.bf16.mxu0 0
    %3143 = vmatpush1.bf16.msra.mxu0 %v2427
    %3144 = vmatprep.subr.bf16.mxu0 0
    %3145 = vmatpush1.bf16.msra.mxu0 %v2428
    %3146 = vmatprep.subr.bf16.mxu0 0
    %3147 = vmatpush1.bf16.msra.mxu0 %v2429
    %3148 = vmatprep.subr.bf16.mxu0 0
    %3149 = vmatpush1.bf16.msra.mxu0 %v2430
    %3150 = vmatprep.subr.bf16.mxu0 0
    %3151 = vmatpush1.bf16.msra.mxu0 %v2431
    %3152 = vmatprep.mubr.bf16.mxu0 %v968
    %3153 = vmatmul.mubr.bf16.gmra.mrb[0].mxu0 %v967
    %v3154 = vpop.f32.mrb[0].mxu0
    %v3155 = vadd.f32 %v3115, %v3154
    %v3156 = vpop.f32.mrb[0].mxu0
    %v3157 = vpop.f32.mrb[0].mxu0
    %v3158 = vpop.f32.mrb[0].mxu0
    %3159 = vdwg.mxu0
    %3160 = vst [vmem:[%s5] sm:$0xff] %v3155
    // Predicated region
    $region26: #{ensemble_forward.1} parent=1 // pred_check
      _
    $region27: #{ensemble_forward.1} parent=1 // pred_check_branch
      %3162 = sbr.rel (0) target = $region29
    $region28: #{ensemble_forward.1} parent=1 // pred_region
      _
    $region29: #{ensemble_forward.1} parent=1 // pred_fallthru
      _
    // Predicated region
    $region30: #{ensemble_forward.1} parent=1 // pred_check
      _
    $region31: #{ensemble_forward.1} parent=1 // pred_check_branch
      %3164 = sbr.rel (0) target = $region33
    $region32: #{ensemble_forward.1} parent=1 // pred_region
      _
    $region33: #{ensemble_forward.1} parent=1 // pred_fallthru
      _
    %3165 = vsyncpa [#allocation3], 1

</llo_original>
